<compile_context>
chip_gen: v6e
topology: v6e:2x2x1
jax: 0.10.0
libtpu: 0.0.40
codegen_flags: <defaults>
</compile_context>

<pallas_src>
import jax
import jax.numpy as jnp
from jax import lax
from jax.experimental import pallas as pl
from jax.experimental.pallas import tpu as pltpu


def _make_pointer_kernel(Bt, nd_tile, Ne, H):
    def kernel(xd_ref, xe_ref, w1t_ref, w2t_ref, v_ref, out_ref, enc_ref):
        t = pl.program_id(1)

        # Encoder projection: once per batch-group (first decoder tile only);
        # enc_ref scratch persists across the "arbitrary" nd-tile grid axis.
        @pl.when(t == 0)
        def _():
            w1t = w1t_ref[...]
            for b in range(Bt):                                     # static, small
                enc_ref[b, :, :] = jnp.dot(xe_ref[b], w1t,
                                           preferred_element_type=jnp.float32)

        w2t = w2t_ref[...]                                          # hoisted
        v_row = v_ref[...].reshape(1, 1, H)                         # hoisted

        for b in range(Bt):                                         # static, small
            # Decoder projection for this (batch, decoder-row tile) on the MXU.
            dec_t = jnp.dot(xd_ref[b], w2t,
                            preferred_element_type=jnp.float32)     # (nd_tile, H)
            enc_b = enc_ref[b, :, :]                                 # (Ne, H)

            # Bounded rank-3 additive-attention block (nd_tile, Ne, H):
            # add on VPU, tanh on EUP, weighted lane-reduce on VPU/XLU.
            s = jnp.tanh(enc_b[None, :, :] + dec_t[:, None, :])
            prod = jnp.sum(s * v_row, axis=-1)                       # (nd_tile, Ne)

            # Numerically stable log-softmax over the encoder axis.
            m = jnp.max(prod, axis=-1, keepdims=True)
            lse = jnp.log(jnp.sum(jnp.exp(prod - m), axis=-1, keepdims=True)) + m
            out_ref[b, :, :] = (prod - lse).astype(out_ref.dtype)

    return kernel


def pointer_network(x_decoder, x_encoder, w1, w2, v, *,
                    batch_tile=None, nd_tile=None):
    """log_softmax(v . tanh(W1 x_enc[j] + W2 x_dec[i]), axis=-1).

    w1, w2: (H, H) nn.Linear weights (out, in); v: (1, H). No biases.
    """
    B, Nd, H = x_decoder.shape
    Be, Ne, He = x_encoder.shape
    assert Be == B and He == H

    # Batch elements per grid step (fills per-step overhead, megacore-friendly).
    if batch_tile is None:
        batch_tile = next(c for c in (8, 4, 2, 1) if B % c == 0)
    assert B % batch_tile == 0
    Bt = batch_tile

    # Decoder-row tile: bound the live (nd_tile, Ne, H) tanh block to ~4 MiB.
    if nd_tile is None:
        budget_rows = max(8, (4 * 1024 * 1024) // max(1, Ne * H * 4))
        if Nd <= budget_rows:
            nd_tile = Nd
        else:
            nd_tile = next((c for c in (256, 128, 64, 32, 16, 8)
                            if c <= budget_rows and Nd % c == 0), Nd)
    assert Nd % nd_tile == 0
    num_nd_tiles = Nd // nd_tile

    # Pre-transpose weights once in XLA so the kernel does x @ Wt directly.
    w1_t = jnp.asarray(w1, jnp.float32).T
    w2_t = jnp.asarray(w2, jnp.float32).T
    v2 = jnp.asarray(v, jnp.float32).reshape(1, H)

    kernel = _make_pointer_kernel(Bt, nd_tile, Ne, H)

    return pl.pallas_call(
        kernel,
        out_shape=jax.ShapeDtypeStruct((B, Nd, Ne), jnp.float32),
        grid_spec=pltpu.PrefetchScalarGridSpec(
            num_scalar_prefetch=0,
            grid=(B // Bt, num_nd_tiles),
            in_specs=[
                pl.BlockSpec((Bt, nd_tile, H), lambda g, t: (g, t, 0)),  # x_decoder tile
                pl.BlockSpec((Bt, Ne, H), lambda g, t: (g, 0, 0)),       # x_encoder (resident per group)
                pl.BlockSpec((H, H), lambda g, t: (0, 0)),               # W1^T
                pl.BlockSpec((H, H), lambda g, t: (0, 0)),               # W2^T
                pl.BlockSpec((1, H), lambda g, t: (0, 0)),               # v
            ],
            out_specs=pl.BlockSpec((Bt, nd_tile, Ne), lambda g, t: (g, t, 0)),
            scratch_shapes=[
                pltpu.VMEM((Bt, Ne, H), jnp.float32),    # encoder activations per group
            ],
        ),
        compiler_params=pltpu.CompilerParams(
            dimension_semantics=("parallel", "arbitrary"),
            vmem_limit_bytes=32 * 1024 * 1024,
        ),
    )(x_decoder.astype(jnp.float32), x_encoder.astype(jnp.float32),
      w1_t, w2_t, v2)


def reference(x_decoder, x_encoder, w1, w2, v):
    enc = jnp.einsum("bnh,oh->bno", x_encoder, w1,
                     precision=lax.Precision.HIGHEST)        # (B, Ne, H)
    dec = jnp.einsum("bmh,oh->bmo", x_decoder, w2,
                     precision=lax.Precision.HIGHEST)        # (B, Nd, H)
    t = jnp.tanh(enc[:, None, :, :] + dec[:, :, None, :])    # (B, Nd, Ne, H)
    prod = jnp.einsum("bmnh,oh->bmno", t, v,
                      precision=lax.Precision.HIGHEST)[..., 0]
    return jax.nn.log_softmax(prod, axis=-1)


if __name__ == "__main__":
    B, Nd, Ne, H = 4, 16, 16, 32

    key = jax.random.PRNGKey(0)
    k_xd, k_xe, k_w1, k_w2, k_v = jax.random.split(key, 5)

    x_decoder = jax.random.normal(k_xd, (B, Nd, H), dtype=jnp.float32)
    x_encoder = jax.random.normal(k_xe, (B, Ne, H), dtype=jnp.float32)

    # Deterministic params matching nn.Linear shapes: (H, H), (H, H), (1, H).
    bound = 1.0 / (H ** 0.5)
    w1 = jax.random.uniform(k_w1, (H, H), jnp.float32, -bound, bound)
    w2 = jax.random.uniform(k_w2, (H, H), jnp.float32, -bound, bound)
    v = jax.random.uniform(k_v, (1, H), jnp.float32, -bound, bound)

    # batch_tile=2, nd_tile=8 -> 2x2 grid: exercises both the per-group encoder
    # projection (pl.when) and the pipelined decoder-row tiling.
    out = pointer_network(x_decoder, x_encoder, w1, w2, v,
                          batch_tile=2, nd_tile=8)
    out = jax.block_until_ready(out)

    ref = reference(x_decoder, x_encoder, w1, w2, v)
    assert out.shape == (B, Nd, Ne)
    max_err = float(jnp.max(jnp.abs(out - ref)))
    assert jnp.allclose(out, ref, atol=2e-4, rtol=2e-4), \
        f"mismatch vs reference (max abs err {max_err})"

    print("KERNEL_OK")
</pallas_src>

<mosaic_0001>
module attributes {stable_mosaic.version = 11 : i64} {
  func.func @kernel(%arg0: i32, %arg1: i32, %arg2: memref<2x8x32xf32, #tpu.memory_space<vmem>>, %arg3: memref<2x16x32xf32, #tpu.memory_space<vmem>>, %arg4: memref<32x32xf32, #tpu.memory_space<vmem>>, %arg5: memref<32x32xf32, #tpu.memory_space<vmem>>, %arg6: memref<1x32xf32, #tpu.memory_space<vmem>>, %arg7: memref<2x8x16xf32, #tpu.memory_space<vmem>>, %arg8: memref<2x16x32xf32, #tpu.memory_space<vmem>>) attributes {dimension_semantics = [#tpu.dimension_semantics<parallel>, #tpu.dimension_semantics<arbitrary>], iteration_bounds = array<i64: 2, 2>, scalar_prefetch = 0 : i64, scratch_operands = 1 : i64, tpu.core_type = #tpu.core_type<tc>, window_params = [{transform_indices = @transform_0, window_bounds = array<i64: 2, 8, 32>}, {transform_indices = @transform_1, window_bounds = array<i64: 2, 16, 32>}, {pipeline_mode = #tpu.pipeline_mode<synchronous>, transform_indices = @transform_2, window_bounds = array<i64: 32, 32>}, {pipeline_mode = #tpu.pipeline_mode<synchronous>, transform_indices = @transform_3, window_bounds = array<i64: 32, 32>}, {pipeline_mode = #tpu.pipeline_mode<synchronous>, transform_indices = @transform_4, window_bounds = array<i64: 1, 32>}, {transform_indices = @transform_5, window_bounds = array<i64: 2, 8, 16>}]} {
    %c0_i32 = arith.constant 0 : i32
    %0 = arith.cmpi eq, %arg1, %c0_i32 : i32
    %1 = arith.extui %0 : i1 to i32
    %c0_i32_0 = arith.constant 0 : i32
    %2 = arith.cmpi ne, %1, %c0_i32_0 : i32
    scf.if %2 {
      %c0_28 = arith.constant 0 : index
      %c0_29 = arith.constant 0 : index
      %62 = vector.load %arg4[%c0_28, %c0_29] : memref<32x32xf32, #tpu.memory_space<vmem>>, vector<32x32xf32>
      %c0_30 = arith.constant 0 : index
      %c0_31 = arith.constant 0 : index
      %c0_32 = arith.constant 0 : index
      %63 = vector.load %arg3[%c0_30, %c0_31, %c0_32] : memref<2x16x32xf32, #tpu.memory_space<vmem>>, vector<1x16x32xf32>
      %64 = vector.shape_cast %63 : vector<1x16x32xf32> to vector<16x32xf32>
      %cst_33 = arith.constant dense<0.000000e+00> : vector<16x32xf32>
      %65 = tpu.matmul %64, %62, %cst_33 {dimension_numbers = #tpu.dot_dimension_numbers<[1], [0], [0], [1], [0, 0, 1, 1], [], []>} : vector<16x32xf32>, vector<32x32xf32>, vector<16x32xf32> -> vector<16x32xf32>
      %c0_34 = arith.constant 0 : index
      %c0_35 = arith.constant 0 : index
      %c0_36 = arith.constant 0 : index
      %66 = vector.load %arg8[%c0_34, %c0_35, %c0_36] : memref<2x16x32xf32, #tpu.memory_space<vmem>>, vector<1x16x32xf32>
      %67 = vector.shape_cast %66 : vector<1x16x32xf32> to vector<16x32xf32>
      %68 = vector.shape_cast %65 : vector<16x32xf32> to vector<1x16x32xf32>
      tpu.vector_store %arg8[%c0_34, %c0_35, %c0_36], %68 {strides = array<i32>} : memref<2x16x32xf32, #tpu.memory_space<vmem>>, vector<1x16x32xf32>,
      %c1_37 = arith.constant 1 : index
      %c0_38 = arith.constant 0 : index
      %c0_39 = arith.constant 0 : index
      %69 = vector.load %arg3[%c1_37, %c0_38, %c0_39] : memref<2x16x32xf32, #tpu.memory_space<vmem>>, vector<1x16x32xf32>
      %70 = vector.shape_cast %69 : vector<1x16x32xf32> to vector<16x32xf32>
      %cst_40 = arith.constant dense<0.000000e+00> : vector<16x32xf32>
      %71 = tpu.matmul %70, %62, %cst_40 {dimension_numbers = #tpu.dot_dimension_numbers<[1], [0], [0], [1], [0, 0, 1, 1], [], []>} : vector<16x32xf32>, vector<32x32xf32>, vector<16x32xf32> -> vector<16x32xf32>
      %c1_41 = arith.constant 1 : index
      %c0_42 = arith.constant 0 : index
      %c0_43 = arith.constant 0 : index
      %72 = vector.load %arg8[%c1_41, %c0_42, %c0_43] : memref<2x16x32xf32, #tpu.memory_space<vmem>>, vector<1x16x32xf32>
      %73 = vector.shape_cast %72 : vector<1x16x32xf32> to vector<16x32xf32>
      %74 = vector.shape_cast %71 : vector<16x32xf32> to vector<1x16x32xf32>
      tpu.vector_store %arg8[%c1_41, %c0_42, %c0_43], %74 {strides = array<i32>} : memref<2x16x32xf32, #tpu.memory_space<vmem>>, vector<1x16x32xf32>,
    } else {
    }
    %c0 = arith.constant 0 : index
    %c0_1 = arith.constant 0 : index
    %3 = vector.load %arg5[%c0, %c0_1] : memref<32x32xf32, #tpu.memory_space<vmem>>, vector<32x32xf32>
    %c0_2 = arith.constant 0 : index
    %c0_3 = arith.constant 0 : index
    %4 = vector.load %arg6[%c0_2, %c0_3] : memref<1x32xf32, #tpu.memory_space<vmem>>, vector<1x32xf32>
    %5 = vector.shape_cast %4 : vector<1x32xf32> to vector<1x1x32xf32>
    %c0_4 = arith.constant 0 : index
    %c0_5 = arith.constant 0 : index
    %c0_6 = arith.constant 0 : index
    %6 = vector.load %arg2[%c0_4, %c0_5, %c0_6] : memref<2x8x32xf32, #tpu.memory_space<vmem>>, vector<1x8x32xf32>
    %7 = vector.shape_cast %6 : vector<1x8x32xf32> to vector<8x32xf32>
    %cst = arith.constant dense<0.000000e+00> : vector<8x32xf32>
    %8 = tpu.matmul %7, %3, %cst {dimension_numbers = #tpu.dot_dimension_numbers<[1], [0], [0], [1], [0, 0, 1, 1], [], []>} : vector<8x32xf32>, vector<32x32xf32>, vector<8x32xf32> -> vector<8x32xf32>
    %c0_7 = arith.constant 0 : index
    %c0_8 = arith.constant 0 : index
    %c0_9 = arith.constant 0 : index
    %9 = vector.load %arg8[%c0_7, %c0_8, %c0_9] : memref<2x16x32xf32, #tpu.memory_space<vmem>>, vector<1x16x32xf32>
    %10 = vector.shape_cast %9 : vector<1x16x32xf32> to vector<16x32xf32>
    %11 = vector.shape_cast %10 : vector<16x32xf32> to vector<1x16x32xf32>
    %12 = vector.shape_cast %8 : vector<8x32xf32> to vector<8x1x32xf32>
    %13 = vector.broadcast %11 : vector<1x16x32xf32> to vector<8x16x32xf32>
    %14 = vector.broadcast %12 : vector<8x1x32xf32> to vector<8x16x32xf32>
    %15 = arith.addf %13, %14 : vector<8x16x32xf32>
    %16 = math.tanh %15 : vector<8x16x32xf32>
    %17 = vector.broadcast %5 : vector<1x1x32xf32> to vector<8x16x32xf32>
    %18 = arith.mulf %16, %17 : vector<8x16x32xf32>
    %cst_10 = arith.constant dense<0.000000e+00> : vector<8x16xf32>
    %19 = vector.multi_reduction <add>, %18, %cst_10 [2] : vector<8x16x32xf32> to vector<8x16xf32>
    %cst_11 = arith.constant dense<0xFF800000> : vector<8xf32>
    %20 = vector.multi_reduction <maximumf>, %19, %cst_11 [1] : vector<8x16xf32> to vector<8xf32>
    %21 = vector.shape_cast %20 : vector<8xf32> to vector<8x1xf32>
    %22 = vector.broadcast %21 : vector<8x1xf32> to vector<8x16xf32>
    %23 = arith.subf %19, %22 : vector<8x16xf32>
    %24 = math.exp %23 : vector<8x16xf32>
    %cst_12 = arith.constant dense<0.000000e+00> : vector<8xf32>
    %25 = vector.multi_reduction <add>, %24, %cst_12 [1] : vector<8x16xf32> to vector<8xf32>
    %26 = vector.shape_cast %25 : vector<8xf32> to vector<8x1xf32>
    %27 = math.log %26 : vector<8x1xf32>
    %28 = arith.addf %27, %21 : vector<8x1xf32>
    %29 = vector.broadcast %28 : vector<8x1xf32> to vector<8x16xf32>
    %30 = arith.subf %19, %29 : vector<8x16xf32>
    %c0_13 = arith.constant 0 : index
    %c0_14 = arith.constant 0 : index
    %c0_15 = arith.constant 0 : index
    %31 = vector.load %arg7[%c0_13, %c0_14, %c0_15] : memref<2x8x16xf32, #tpu.memory_space<vmem>>, vector<1x8x16xf32>
    %32 = vector.shape_cast %31 : vector<1x8x16xf32> to vector<8x16xf32>
    %33 = vector.shape_cast %30 : vector<8x16xf32> to vector<1x8x16xf32>
    tpu.vector_store %arg7[%c0_13, %c0_14, %c0_15], %33 {strides = array<i32>} : memref<2x8x16xf32, #tpu.memory_space<vmem>>, vector<1x8x16xf32>,
    %c1 = arith.constant 1 : index
    %c0_16 = arith.constant 0 : index
    %c0_17 = arith.constant 0 : index
    %34 = vector.load %arg2[%c1, %c0_16, %c0_17] : memref<2x8x32xf32, #tpu.memory_space<vmem>>, vector<1x8x32xf32>
    %35 = vector.shape_cast %34 : vector<1x8x32xf32> to vector<8x32xf32>
    %cst_18 = arith.constant dense<0.000000e+00> : vector<8x32xf32>
    %36 = tpu.matmul %35, %3, %cst_18 {dimension_numbers = #tpu.dot_dimension_numbers<[1], [0], [0], [1], [0, 0, 1, 1], [], []>} : vector<8x32xf32>, vector<32x32xf32>, vector<8x32xf32> -> vector<8x32xf32>
    %c1_19 = arith.constant 1 : index
    %c0_20 = arith.constant 0 : index
    %c0_21 = arith.constant 0 : index
    %37 = vector.load %arg8[%c1_19, %c0_20, %c0_21] : memref<2x16x32xf32, #tpu.memory_space<vmem>>, vector<1x16x32xf32>
    %38 = vector.shape_cast %37 : vector<1x16x32xf32> to vector<16x32xf32>
    %39 = vector.shape_cast %38 : vector<16x32xf32> to vector<1x16x32xf32>
    %40 = vector.shape_cast %36 : vector<8x32xf32> to vector<8x1x32xf32>
    %41 = vector.broadcast %39 : vector<1x16x32xf32> to vector<8x16x32xf32>
    %42 = vector.broadcast %40 : vector<8x1x32xf32> to vector<8x16x32xf32>
    %43 = arith.addf %41, %42 : vector<8x16x32xf32>
    %44 = math.tanh %43 : vector<8x16x32xf32>
    %45 = vector.broadcast %5 : vector<1x1x32xf32> to vector<8x16x32xf32>
    %46 = arith.mulf %44, %45 : vector<8x16x32xf32>
    %cst_22 = arith.constant dense<0.000000e+00> : vector<8x16xf32>
    %47 = vector.multi_reduction <add>, %46, %cst_22 [2] : vector<8x16x32xf32> to vector<8x16xf32>
    %cst_23 = arith.constant dense<0xFF800000> : vector<8xf32>
    %48 = vector.multi_reduction <maximumf>, %47, %cst_23 [1] : vector<8x16xf32> to vector<8xf32>
    %49 = vector.shape_cast %48 : vector<8xf32> to vector<8x1xf32>
    %50 = vector.broadcast %49 : vector<8x1xf32> to vector<8x16xf32>
    %51 = arith.subf %47, %50 : vector<8x16xf32>
    %52 = math.exp %51 : vector<8x16xf32>
    %cst_24 = arith.constant dense<0.000000e+00> : vector<8xf32>
    %53 = vector.multi_reduction <add>, %52, %cst_24 [1] : vector<8x16xf32> to vector<8xf32>
    %54 = vector.shape_cast %53 : vector<8xf32> to vector<8x1xf32>
    %55 = math.log %54 : vector<8x1xf32>
    %56 = arith.addf %55, %49 : vector<8x1xf32>
    %57 = vector.broadcast %56 : vector<8x1xf32> to vector<8x16xf32>
    %58 = arith.subf %47, %57 : vector<8x16xf32>
    %c1_25 = arith.constant 1 : index
    %c0_26 = arith.constant 0 : index
    %c0_27 = arith.constant 0 : index
    %59 = vector.load %arg7[%c1_25, %c0_26, %c0_27] : memref<2x8x16xf32, #tpu.memory_space<vmem>>, vector<1x8x16xf32>
    %60 = vector.shape_cast %59 : vector<1x8x16xf32> to vector<8x16xf32>
    %61 = vector.shape_cast %58 : vector<8x16xf32> to vector<1x8x16xf32>
    tpu.vector_store %arg7[%c1_25, %c0_26, %c0_27], %61 {strides = array<i32>} : memref<2x8x16xf32, #tpu.memory_space<vmem>>, vector<1x8x16xf32>,
    return
  }
  func.func @transform_0(%arg0: i32, %arg1: i32) -> (i32, i32, i32) {
    %c0_i32 = arith.constant 0 : i32
    %c0_i32_0 = arith.constant 0 : i32
    return %arg0, %arg1, %c0_i32 : i32, i32, i32
  }
  func.func @transform_1(%arg0: i32, %arg1: i32) -> (i32, i32, i32) {
    %c0_i32 = arith.constant 0 : i32
    %c0_i32_0 = arith.constant 0 : i32
    %c0_i32_1 = arith.constant 0 : i32
    return %arg0, %c0_i32, %c0_i32_0 : i32, i32, i32
  }
  func.func @transform_2(%arg0: i32, %arg1: i32) -> (i32, i32) {
    %c0_i32 = arith.constant 0 : i32
    %c0_i32_0 = arith.constant 0 : i32
    %c0_i32_1 = arith.constant 0 : i32
    return %c0_i32, %c0_i32_0 : i32, i32
  }
  func.func @transform_3(%arg0: i32, %arg1: i32) -> (i32, i32) {
    %c0_i32 = arith.constant 0 : i32
    %c0_i32_0 = arith.constant 0 : i32
    %c0_i32_1 = arith.constant 0 : i32
    return %c0_i32, %c0_i32_0 : i32, i32
  }
  func.func @transform_4(%arg0: i32, %arg1: i32) -> (i32, i32) {
    %c0_i32 = arith.constant 0 : i32
    %c0_i32_0 = arith.constant 0 : i32
    %c0_i32_1 = arith.constant 0 : i32
    return %c0_i32, %c0_i32_0 : i32, i32
  }
  func.func @transform_5(%arg0: i32, %arg1: i32) -> (i32, i32, i32) {
    %c0_i32 = arith.constant 0 : i32
    %c0_i32_0 = arith.constant 0 : i32
    return %arg0, %arg1, %c0_i32 : i32, i32, i32
  }
}

</mosaic_0001>

<llo_original>
// kernel: tpu_custom_call.1
$region0: #{tpu_custom_call.1}
  #allocation0 [shape = 'u32[]', space=smem, size = 0x4, offset = 0x4, fixed_abs, tag = 'smem constant byte address 0x4 - core index']
  #allocation1 [shape = 'u32[144,128]{1,0:T(1,128)}', space=vmem, size = 0x12000, scoped, tag = 'internal scratch']
  #allocation2 [shape = 'f32[2,16,32]{2,1,0:T(8,128)}', space=vmem, size = 0x4000, scoped, tag = 'scratch operand']
  %s0 = inlined_call_operand.hbm [shape: f32[4,16,32], index: 0, kind: input, shape index: {}]
  %s1 = inlined_call_operand.hbm [shape: f32[4,16,32], index: 1, kind: input, shape index: {}]
  %s2 = inlined_call_operand.hbm [shape: f32[32,32], index: 2, kind: input, shape index: {}]
  %s3 = inlined_call_operand.hbm [shape: f32[32,32], index: 3, kind: input, shape index: {}]
  %s4 = inlined_call_operand.vmem [shape: f32[1,32], index: 4, kind: input, shape index: {}]
  %s5 = inlined_call_operand.hbm [shape: f32[4,16,16], index: 5, kind: output, shape index: {}]
  %s6 = sld [smem:[#allocation0]]
  $region73: #{tpu_custom_call.1} parent=0
    _
  %s8 = ssub.s32 1, %s6
  %s9 = scalar_select 0, %s8, %s6
  $region1: #{tpu_custom_call.1} parent=0
    #allocation3 [shape = 'u8[16384]{0}', space=vmem, size = 0x4000, scoped, tag = 'input window, operand 0']
    #allocation4 [shape = 's32[2]{0}', space=sflag, size = 0x8, scoped, tag = 'scoped memory for tpu_custom_call.1']
    #allocation5 [shape = 's32[2]{0}', space=sflag, size = 0x8, scoped, tag = 'scoped memory for tpu_custom_call.1']
    #allocation6 [shape = 'u8[32768]{0}', space=vmem, size = 0x8000, scoped, tag = 'input window, operand 1']
    #allocation7 [shape = 's32[2]{0}', space=sflag, size = 0x8, scoped, tag = 'scoped memory for tpu_custom_call.1']
    #allocation8 [shape = 'u8[16384]{0}', space=vmem, size = 0x4000, scoped, tag = 'input window, operand 2, single buffered']
    #allocation9 [shape = 'u8[16384]{0}', space=vmem, size = 0x4000, scoped, tag = 'input window, operand 3, single buffered']
    #allocation10 [shape = 's32[1]{0}', space=sflag, size = 0x4, scoped, tag = 'scoped memory for tpu_custom_call.1']
    #allocation11 [shape = 'u8[16384]{0}', space=vmem, size = 0x4000, scoped, tag = 'output window, operand 0']
    %10 = vsyncpa [#allocation4], 0
    %s11 = scalar_lea.sflag [#allocation4], 1
    %12 = vsyncpa %s11, 0
    %13 = vsyncpa [#allocation7], 0
    %s14 = scalar_lea.sflag [#allocation7], 1
    %15 = vsyncpa %s14, 0
    %16 = vsyncpa [#allocation10], 0
    %17 = vsyncpa [#allocation5], 0
    %s18 = scalar_lea.sflag [#allocation5], 1
    %19 = vsyncpa %s18, 0
    loop: start=0, step=1, limit=6
    $region2: #{tpu_custom_call.1} parent=1 // loop_pre_header
      _
    $region3: #{tpu_custom_call.1} parent=1 // loop_header
      %s21 = sphi 0, %s25
      %p22 = scmp.ge.s32.totalorder %s21, 6
      %s28 = sphi 0, %s40
      %s29 = sphi 0, %s36
      %s30 = sphi 0, %s28
      %s31 = sphi 0, %s29
      %s32 = sphi 0, %s30
      %s33 = sphi 0, %s31
      %s45 = sphi 0, %s47
      %s48 = sphi 0, %s45
      %s49 = sphi 0, %s48
      %s65 = sphi 0, %s49
      %s71 = sphi 0, %s73
      %s74 = sphi 0, %s71
      %s75 = sphi 0, %s74
      %s91 = sphi 0, %s75
      %s95 = sphi 0, %s95
      %s97 = sphi 0, %s95
      %s98 = sphi 0, %s97
      %s112 = sphi 0, %s98
      %s116 = sphi 0, %s116
      %s118 = sphi 0, %s116
      %s119 = sphi 0, %s118
      %s133 = sphi 0, %s119
      %s137 = sphi 0, %s137
      %s139 = sphi 0, %s137
      %s140 = sphi 0, %s139
      %s154 = sphi 0, %s140
      %s162 = sphi 0, %s164
      %s165 = sphi 0, %s162
      %s166 = sphi 0, %s165
      %s182 = sphi 0, %s166
    $region4: #{tpu_custom_call.1} parent=1 // loop_header_branch
      %24 = sbr.rel (%p22) target = $region8
    $region5: #{tpu_custom_call.1} parent=1 // loop_body
      %s26 = ssub.s32 %s21, 1
      %s27 = ssub.s32 %s21, 2
      %s34 = sadd.s32 1, %s29
      %p35 = scmp.ge.s32.totalorder %s34, 2
      %s36 = scalar_select %p35, 0, %s34
      %s37 = sadd.s32 1, %s28
      %s38 = scalar_select %p35, %s37, %s28
      %p39 = scmp.ge.s32.totalorder %s38, 2
      %s40 = scalar_select %p39, 0, %s38
      %s41 = ssub.s32 %s28, %s40
      %s42 = ssub.s32 %s29, %s36
      %s43 = sor.u32 %s41, %s42
      %p44 = scmp.eq.s32.totalorder %s43, 0
      %s46 = sadd.s32 %s45, 1
      %s47 = scalar_select %p44, %s45, %s46
      %p50 = pneg %p44
      %p51 = scmp.eq.s32.totalorder %s21, 3
      %p52 = por %p50, %p51
      %p53 = scmp.ne.s32.totalorder %s45, %s48
      %p54 = scmp.eq.s32.totalorder %s21, 0
      %p55 = por %p53, %p54
      %p56 = scmp.ne.s32.totalorder %s45, %s48
      %p57 = scmp.eq.s32.totalorder %s26, 3
      %p58 = por %p56, %p57
      %p59 = scmp.ne.s32.totalorder %s48, %s49
      %p60 = scmp.eq.s32.totalorder %s26, 0
      %p61 = por %p59, %p60
      %p62 = scmp.ne.s32.totalorder %s48, %s49
      %p63 = scmp.eq.s32.totalorder %s27, 3
      %p64 = por %p62, %p63
      %p66 = scmp.ne.s32.totalorder %s49, %s65
      %p67 = scmp.eq.s32.totalorder %s27, 0
      %p68 = por %p66, %p67
      %s69 = ssub.s32 %s28, %s40
      %p70 = scmp.eq.s32.totalorder %s69, 0
      %s72 = sadd.s32 %s71, 1
      %s73 = scalar_select %p70, %s71, %s72
      %p76 = pneg %p70
      %p77 = scmp.eq.s32.totalorder %s21, 3
      %p78 = por %p76, %p77
      %p79 = scmp.ne.s32.totalorder %s71, %s74
      %p80 = scmp.eq.s32.totalorder %s21, 0
      %p81 = por %p79, %p80
      %p82 = scmp.ne.s32.totalorder %s71, %s74
      %p83 = scmp.eq.s32.totalorder %s26, 3
      %p84 = por %p82, %p83
      %p85 = scmp.ne.s32.totalorder %s74, %s75
      %p86 = scmp.eq.s32.totalorder %s26, 0
      %p87 = por %p85, %p86
      %p88 = scmp.ne.s32.totalorder %s74, %s75
      %p89 = scmp.eq.s32.totalorder %s27, 3
      %p90 = por %p88, %p89
      %p92 = scmp.ne.s32.totalorder %s75, %s91
      %p93 = scmp.eq.s32.totalorder %s27, 0
      %p94 = por %p92, %p93
      %s96 = sadd.s32 %s95, 1
      %p99 = scmp.eq.s32.totalorder %s21, 3
      %p100 = scmp.ne.s32.totalorder %s95, %s97
      %p101 = scmp.eq.s32.totalorder %s21, 0
      %p102 = por %p100, %p101
      %p103 = scmp.ne.s32.totalorder %s95, %s97
      %p104 = scmp.eq.s32.totalorder %s26, 3
      %p105 = por %p103, %p104
      %p106 = scmp.ne.s32.totalorder %s97, %s98
      %p107 = scmp.eq.s32.totalorder %s26, 0
      %p108 = por %p106, %p107
      %p109 = scmp.ne.s32.totalorder %s97, %s98
      %p110 = scmp.eq.s32.totalorder %s27, 3
      %p111 = por %p109, %p110
      %p113 = scmp.ne.s32.totalorder %s98, %s112
      %p114 = scmp.eq.s32.totalorder %s27, 0
      %p115 = por %p113, %p114
      %s117 = sadd.s32 %s116, 1
      %p120 = scmp.eq.s32.totalorder %s21, 3
      %p121 = scmp.ne.s32.totalorder %s116, %s118
      %p122 = scmp.eq.s32.totalorder %s21, 0
      %p123 = por %p121, %p122
      %p124 = scmp.ne.s32.totalorder %s116, %s118
      %p125 = scmp.eq.s32.totalorder %s26, 3
      %p126 = por %p124, %p125
      %p127 = scmp.ne.s32.totalorder %s118, %s119
      %p128 = scmp.eq.s32.totalorder %s26, 0
      %p129 = por %p127, %p128
      %p130 = scmp.ne.s32.totalorder %s118, %s119
      %p131 = scmp.eq.s32.totalorder %s27, 3
      %p132 = por %p130, %p131
      %p134 = scmp.ne.s32.totalorder %s119, %s133
      %p135 = scmp.eq.s32.totalorder %s27, 0
      %p136 = por %p134, %p135
      %s138 = sadd.s32 %s137, 1
      %p141 = scmp.eq.s32.totalorder %s21, 3
      %p142 = scmp.ne.s32.totalorder %s137, %s139
      %p143 = scmp.eq.s32.totalorder %s21, 0
      %p144 = por %p142, %p143
      %p145 = scmp.ne.s32.totalorder %s137, %s139
      %p146 = scmp.eq.s32.totalorder %s26, 3
      %p147 = por %p145, %p146
      %p148 = scmp.ne.s32.totalorder %s139, %s140
      %p149 = scmp.eq.s32.totalorder %s26, 0
      %p150 = por %p148, %p149
      %p151 = scmp.ne.s32.totalorder %s139, %s140
      %p152 = scmp.eq.s32.totalorder %s27, 3
      %p153 = por %p151, %p152
      %p155 = scmp.ne.s32.totalorder %s140, %s154
      %p156 = scmp.eq.s32.totalorder %s27, 0
      %p157 = por %p155, %p156
      %s158 = ssub.s32 %s28, %s40
      %s159 = ssub.s32 %s29, %s36
      %s160 = sor.u32 %s158, %s159
      %p161 = scmp.eq.s32.totalorder %s160, 0
      %s163 = sadd.s32 %s162, 1
      %s164 = scalar_select %p161, %s162, %s163
      %p167 = pneg %p161
      %p168 = scmp.eq.s32.totalorder %s21, 3
      %p169 = por %p167, %p168
      %p170 = scmp.ne.s32.totalorder %s162, %s165
      %p171 = scmp.eq.s32.totalorder %s21, 0
      %p172 = por %p170, %p171
      %p173 = scmp.ne.s32.totalorder %s162, %s165
      %p174 = scmp.eq.s32.totalorder %s26, 3
      %p175 = por %p173, %p174
      %p176 = scmp.ne.s32.totalorder %s165, %s166
      %p177 = scmp.eq.s32.totalorder %s26, 0
      %p178 = por %p176, %p177
      %p179 = scmp.ne.s32.totalorder %s165, %s166
      %p180 = scmp.eq.s32.totalorder %s27, 3
      %p181 = por %p179, %p180
      %p183 = scmp.ne.s32.totalorder %s166, %s182
      %p184 = scmp.eq.s32.totalorder %s27, 0
      %p185 = por %p183, %p184
      %p186 = scmp.le.s32.totalorder 1, %s21
      %p187 = scmp.lt.s32.totalorder %s21, 5
      %p188 = pnand %p186, %p187
      %p189 = pneg %p188
      // Predicated region
      $region9: #{tpu_custom_call.1} parent=5 // pred_check
        _
      $region10: #{tpu_custom_call.1} parent=5 // pred_check_branch
        %191 = sbr.rel (%p188) target = $region12
      $region11: #{tpu_custom_call.1} parent=5 // pred_region
        %s192 = ssub.s32 %s21, 1
        // Predicated region
        $region13: #{tpu_custom_call.1} parent=11 // pred_check
          %p193 = pneg %p108
        $region14: #{tpu_custom_call.1} parent=11 // pred_check_branch
          %195 = sbr.rel (%p193) target = $region16
        $region15: #{tpu_custom_call.1} parent=11 // pred_region
          %s197 = ssub.s32 512, 512
          %198 = vsyncadd [#allocation7], %s197
          %s199 = sshll.u32 [#allocation8], 4
          %s200 = int_to_ptr.vmem [resolvable:$true] %s199
          %205 = dma.hbm_to_vmem [thread:$0]  %s2, 512, %s200, [#allocation7], 128, 128, 8
        $region16: #{tpu_custom_call.1} parent=11 // pred_fallthru
          _
        // Predicated region
        $region17: #{tpu_custom_call.1} parent=11 // pred_check
          %p206 = pneg %p129
        $region18: #{tpu_custom_call.1} parent=11 // pred_check_branch
          %208 = sbr.rel (%p206) target = $region20
        $region19: #{tpu_custom_call.1} parent=11 // pred_region
          %s210 = ssub.s32 512, 512
          %211 = vsyncadd [#allocation10], %s210
          %s212 = sshll.u32 [#allocation9], 4
          %s213 = int_to_ptr.vmem [resolvable:$true] %s212
          %218 = dma.hbm_to_vmem [thread:$0]  %s3, 512, %s213, [#allocation10], 128, 128, 8
        $region20: #{tpu_custom_call.1} parent=11 // pred_fallthru
          _
        // Predicated region
        $region21: #{tpu_custom_call.1} parent=11 // pred_check
          %p219 = pneg %p150
        $region22: #{tpu_custom_call.1} parent=11 // pred_check_branch
          %221 = sbr.rel (%p219) target = $region24
        $region23: #{tpu_custom_call.1} parent=11 // pred_region
          _
        $region24: #{tpu_custom_call.1} parent=11 // pred_fallthru
          _
      $region12: #{tpu_custom_call.1} parent=5 // pred_fallthru
        _
      %p222 = scmp.lt.s32.totalorder %s21, 4
      // Predicated region
      $region25: #{tpu_custom_call.1} parent=5 // pred_check
        %p223 = pneg %p222
      $region26: #{tpu_custom_call.1} parent=5 // pred_check_branch
        %225 = sbr.rel (%p223) target = $region28
      $region27: #{tpu_custom_call.1} parent=5 // pred_region
        // Predicated region
        $region29: #{tpu_custom_call.1} parent=27 // pred_check
          %p226 = pneg %p55
        $region30: #{tpu_custom_call.1} parent=27 // pred_check_branch
          %228 = sbr.rel (%p226) target = $region32
        $region31: #{tpu_custom_call.1} parent=27 // pred_region
          %s229 = sand.u32 %s45, 1
          %s230 = scalar_lea.sflag [#allocation4], %s229
          %s231 = sand.u32 %s45, 1
          %s232 = smul.addr %s231, 16
          %s233 = scalar_lea.vmem [#allocation3], %s232
          %s234 = smul.u32 2, %s28
          %s236 = ssub.s32 256, 256
          %237 = vsyncadd %s230, %s236
          %s238 = smul.addr %s234, 2
          %s239 = sadd.s32 %s29, %s238
          %s240 = smul.addr %s239, 128
          %s241 = scalar_lea.hbm %s0, %s240
          %s242 = sshll.u32 %s233, 4
          %s243 = int_to_ptr.vmem [resolvable:$true] %s242
          %248 = dma.hbm_to_vmem [thread:$0]  %s241, 256, %s243, %s230, 256, 128, 8
        $region32: #{tpu_custom_call.1} parent=27 // pred_fallthru
          _
        // Predicated region
        $region33: #{tpu_custom_call.1} parent=27 // pred_check
          %p249 = pneg %p81
        $region34: #{tpu_custom_call.1} parent=27 // pred_check_branch
          %251 = sbr.rel (%p249) target = $region36
        $region35: #{tpu_custom_call.1} parent=27 // pred_region
          %s252 = sand.u32 %s21, 1
          %s253 = scalar_lea.sflag [#allocation7], %s252
          %s254 = sand.u32 %s71, 1
          %s255 = smul.addr %s254, 32
          %s256 = scalar_lea.vmem [#allocation6], %s255
          %s257 = smul.u32 2, %s28
          %s259 = ssub.s32 512, 512
          %260 = vsyncadd %s253, %s259
          %s261 = smul.addr %s257, 2
          %s262 = smul.addr %s261, 128
          %s263 = scalar_lea.hbm %s1, %s262
          %s264 = sshll.u32 %s256, 4
          %s265 = int_to_ptr.vmem [resolvable:$true] %s264
          %270 = dma.hbm_to_vmem [thread:$0]  %s263, 512, %s265, %s253, 128, 128, 8
        $region36: #{tpu_custom_call.1} parent=27 // pred_fallthru
          _
      $region28: #{tpu_custom_call.1} parent=5 // pred_fallthru
        _
      %p271 = scmp.le.s32.totalorder 1, %s21
      %p272 = scmp.lt.s32.totalorder %s21, 5
      %p273 = pnand %p271, %p272
      %p274 = pneg %p273
      // Predicated region
      $region37: #{tpu_custom_call.1} parent=5 // pred_check
        _
      $region38: #{tpu_custom_call.1} parent=5 // pred_check_branch
        %276 = sbr.rel (%p273) target = $region40
      $region39: #{tpu_custom_call.1} parent=5 // pred_region
        %s277 = ssub.s32 %s21, 1
        %s278 = sand.u32 %s48, 1
        %s279 = scalar_lea.sflag [#allocation4], %s278
        %s280 = sand.u32 %s48, 1
        %s281 = smul.addr %s280, 16
        %s282 = scalar_lea.vmem [#allocation3], %s281
        // Predicated region
        $region41: #{tpu_custom_call.1} parent=39 // pred_check
          %p283 = pneg %p61
        $region42: #{tpu_custom_call.1} parent=39 // pred_check_branch
          %285 = sbr.rel (%p283) target = $region44
        $region43: #{tpu_custom_call.1} parent=39 // pred_region
          %286 = dma.done %s279, 256
        $region44: #{tpu_custom_call.1} parent=39 // pred_fallthru
          _
        %s287 = sand.u32 %s26, 1
        %s288 = scalar_lea.sflag [#allocation7], %s287
        %s289 = sand.u32 %s74, 1
        %s290 = smul.addr %s289, 32
        %s291 = scalar_lea.vmem [#allocation6], %s290
        // Predicated region
        $region45: #{tpu_custom_call.1} parent=39 // pred_check
          %p292 = pneg %p87
        $region46: #{tpu_custom_call.1} parent=39 // pred_check_branch
          %294 = sbr.rel (%p292) target = $region48
        $region47: #{tpu_custom_call.1} parent=39 // pred_region
          %295 = dma.done %s288, 512
        $region48: #{tpu_custom_call.1} parent=39 // pred_fallthru
          _
        // Predicated region
        $region49: #{tpu_custom_call.1} parent=39 // pred_check
          %p296 = pneg %p108
        $region50: #{tpu_custom_call.1} parent=39 // pred_check_branch
          %298 = sbr.rel (%p296) target = $region52
        $region51: #{tpu_custom_call.1} parent=39 // pred_region
          %299 = dma.done [#allocation7], 512
        $region52: #{tpu_custom_call.1} parent=39 // pred_fallthru
          _
        // Predicated region
        $region53: #{tpu_custom_call.1} parent=39 // pred_check
          %p300 = pneg %p129
        $region54: #{tpu_custom_call.1} parent=39 // pred_check_branch
          %302 = sbr.rel (%p300) target = $region56
        $region55: #{tpu_custom_call.1} parent=39 // pred_region
          %303 = dma.done [#allocation10], 512
        $region56: #{tpu_custom_call.1} parent=39 // pred_fallthru
          _
        %s304 = sand.u32 %s48, 1
        %s305 = scalar_lea.sflag [#allocation4], %s304
        %s306 = sand.u32 %s48, 1
        %s307 = smul.addr %s306, 16
        %s308 = scalar_lea.vmem [#allocation3], %s307
        %p309 = pneg %p61
        %p310 = pneg %p58
        %s311 = sand.u32 %s26, 1
        %s312 = scalar_lea.sflag [#allocation7], %s311
        %s313 = sand.u32 %s74, 1
        %s314 = smul.addr %s313, 32
        %s315 = scalar_lea.vmem [#allocation6], %s314
        %p316 = pneg %p87
        %p317 = pneg %p84
        %p318 = pneg %p108
        %p319 = pneg %p105
        %p320 = pneg %p129
        %p321 = pneg %p126
        %p322 = pneg %p150
        %p323 = pneg %p147
        %p324 = pneg %p178
        %p325 = pneg %p175
        %s326 = sand.u32 %s165, 1
        %s327 = scalar_lea.sflag [#allocation5], %s326
        %s328 = sand.u32 %s165, 1
        %s329 = smul.addr %s328, 16
        %s330 = scalar_lea.vmem [#allocation11], %s329
        %s331 = smul.u32 2, %s30
        %s332 = smul.u32 2, %s30
        %s333 = smul.u32 2, %s30
        %p334 = scmp.eq.s32.totalorder %s31, 0
        // Predicated region
        $region57: #{tpu_custom_call.1} parent=39 // pred_check
          %p335 = pneg %p334
        $region58: #{tpu_custom_call.1} parent=39 // pred_check_branch
          %337 = sbr.rel (%p335) target = $region60
        $region59: #{tpu_custom_call.1} parent=39 // pred_region
          %v338 = vld [vmem:[#allocation8] sm:$0xff]
          %v339 = vld [vmem:[#allocation8 + $0x8] sm:$0xff]
          %v340 = vld [vmem:[#allocation8 + $0x10] sm:$0xff]
          %v341 = vld [vmem:[#allocation8 + $0x18] sm:$0xff]
          %v342 = vld [vmem:[%s291] sm:$0xff]
          %v343 = vld [vmem:[%s291 + $0x8] sm:$0xff]
          %vm344 = vcmask 261120
          %v346 = vsel %vm344, %v342, 0
          %v349 = vsel %vm344, %v343, 0
          %351 = vmatprep.subr.mxu0 0.0
          %352 = vmatpush1.msra.mxu0 0.0
          %353 = vmatprep.subr.mxu0 0.0
          %354 = vmatpush1.msra.mxu0 0.0
          %355 = vmatprep.subr.mxu0 0.0
          %356 = vmatpush1.msra.mxu0 0.0
          %357 = vmatprep.subr.mxu0 0.0
          %358 = vmatpush1.msra.mxu0 0.0
          %359 = vmatprep.subr.mxu0 0.0
          %360 = vmatpush1.msra.mxu0 0.0
          %361 = vmatprep.subr.mxu0 0.0
          %362 = vmatpush1.msra.mxu0 0.0
          %363 = vmatprep.subr.mxu0 0.0
          %364 = vmatpush1.msra.mxu0 0.0
          %365 = vmatprep.subr.mxu0 0.0
          %366 = vmatpush1.msra.mxu0 0.0
          %367 = vmatprep.subr.mxu0 0.0
          %368 = vmatpush1.msra.mxu0 0.0
          %369 = vmatprep.subr.mxu0 0.0
          %370 = vmatpush1.msra.mxu0 0.0
          %371 = vmatprep.subr.mxu0 0.0
          %372 = vmatpush1.msra.mxu0 0.0
          %373 = vmatprep.subr.mxu0 0.0
          %374 = vmatpush1.msra.mxu0 0.0
          %375 = vmatprep.subr.mxu0 0.0
          %376 = vmatpush1.msra.mxu0 %v341
          %377 = vmatprep.subr.mxu0 0.0
          %378 = vmatpush1.msra.mxu0 %v340
          %379 = vmatprep.subr.mxu0 0.0
          %380 = vmatpush1.msra.mxu0 %v339
          %381 = vmatprep.subr.mxu0 0.0
          %382 = vmatpush1.msra.mxu0 %v338
          %383 = vmatprep.subr.mxu0 0.0
          %384 = vmatpush2.msra.mxu0 0.0
          %385 = vmatprep.subr.mxu0 0.0
          %386 = vmatpush2.msra.mxu0 0.0
          %387 = vmatprep.subr.mxu0 0.0
          %388 = vmatpush2.msra.mxu0 0.0
          %389 = vmatprep.subr.mxu0 0.0
          %390 = vmatpush2.msra.mxu0 0.0
          %391 = vmatprep.subr.mxu0 0.0
          %392 = vmatpush2.msra.mxu0 0.0
          %393 = vmatprep.subr.mxu0 0.0
          %394 = vmatpush2.msra.mxu0 0.0
          %395 = vmatprep.subr.mxu0 0.0
          %396 = vmatpush2.msra.mxu0 0.0
          %397 = vmatprep.subr.mxu0 0.0
          %398 = vmatpush2.msra.mxu0 0.0
          %399 = vmatprep.subr.mxu0 0.0
          %400 = vmatpush2.msra.mxu0 0.0
          %401 = vmatprep.subr.mxu0 0.0
          %402 = vmatpush2.msra.mxu0 0.0
          %403 = vmatprep.subr.mxu0 0.0
          %404 = vmatpush2.msra.mxu0 0.0
          %405 = vmatprep.subr.mxu0 0.0
          %406 = vmatpush2.msra.mxu0 0.0
          %407 = vmatprep.subr.mxu0 0.0
          %408 = vmatpush2.msra.mxu0 0.0
          %409 = vmatprep.subr.mxu0 0.0
          %410 = vmatpush2.msra.mxu0 0.0
          %411 = vmatprep.subr.mxu0 0.0
          %412 = vmatpush2.msra.mxu0 0.0
          %413 = vmatprep.subr.mxu0 0.0
          %414 = vmatpush2.msra.mxu0 0.0
          %415 = vmatprep.mubr.f32.mxu0 0.0
          %416 = vmatmul.mubr.f32.gmra.mxu0 %v346
          %v417 = vpop.f32.mrf.mxu0
          %v418 = vadd.f32 0.0, %v417
          %v419 = vpop.f32.mrf.mxu0
          %420 = vmatprep.mubr.f32.mxu0 0.0
          %421 = vmatmul.mubr.f32.gmra.mxu0 %v349
          %v422 = vpop.f32.mrf.mxu0
          %v423 = vadd.f32 0.0, %v422
          %v424 = vpop.f32.mrf.mxu0
          %425 = vdwg.mxu0
          %426 = vst.msk [vmem:[#allocation2] sm:$0xff] %vm344, %v418
          %427 = vst.msk [vmem:[#allocation2 + $0x8] sm:$0xff] %vm344, %v423
          %s428 = scalar_lea.vmem %s291, 16 [#allocation6]
          %v429 = vld [vmem:[%s428] sm:$0xff]
          %v430 = vld [vmem:[%s428 + $0x8] sm:$0xff]
          %v432 = vsel %vm344, %v429, 0
          %v435 = vsel %vm344, %v430, 0
          %437 = vmatprep.subr.mxu0 0.0
          %438 = vmatpush1.msra.mxu0 0.0
          %439 = vmatprep.subr.mxu0 0.0
          %440 = vmatpush1.msra.mxu0 0.0
          %441 = vmatprep.subr.mxu0 0.0
          %442 = vmatpush1.msra.mxu0 0.0
          %443 = vmatprep.subr.mxu0 0.0
          %444 = vmatpush1.msra.mxu0 0.0
          %445 = vmatprep.subr.mxu0 0.0
          %446 = vmatpush1.msra.mxu0 0.0
          %447 = vmatprep.subr.mxu0 0.0
          %448 = vmatpush1.msra.mxu0 0.0
          %449 = vmatprep.subr.mxu0 0.0
          %450 = vmatpush1.msra.mxu0 0.0
          %451 = vmatprep.subr.mxu0 0.0
          %452 = vmatpush1.msra.mxu0 0.0
          %453 = vmatprep.subr.mxu0 0.0
          %454 = vmatpush1.msra.mxu0 0.0
          %455 = vmatprep.subr.mxu0 0.0
          %456 = vmatpush1.msra.mxu0 0.0
          %457 = vmatprep.subr.mxu0 0.0
          %458 = vmatpush1.msra.mxu0 0.0
          %459 = vmatprep.subr.mxu0 0.0
          %460 = vmatpush1.msra.mxu0 0.0
          %461 = vmatprep.subr.mxu0 0.0
          %462 = vmatpush1.msra.mxu0 %v341
          %463 = vmatprep.subr.mxu0 0.0
          %464 = vmatpush1.msra.mxu0 %v340
          %465 = vmatprep.subr.mxu0 0.0
          %466 = vmatpush1.msra.mxu0 %v339
          %467 = vmatprep.subr.mxu0 0.0
          %468 = vmatpush1.msra.mxu0 %v338
          %469 = vmatprep.subr.mxu0 0.0
          %470 = vmatpush2.msra.mxu0 0.0
          %471 = vmatprep.subr.mxu0 0.0
          %472 = vmatpush2.msra.mxu0 0.0
          %473 = vmatprep.subr.mxu0 0.0
          %474 = vmatpush2.msra.mxu0 0.0
          %475 = vmatprep.subr.mxu0 0.0
          %476 = vmatpush2.msra.mxu0 0.0
          %477 = vmatprep.subr.mxu0 0.0
          %478 = vmatpush2.msra.mxu0 0.0
          %479 = vmatprep.subr.mxu0 0.0
          %480 = vmatpush2.msra.mxu0 0.0
          %481 = vmatprep.subr.mxu0 0.0
          %482 = vmatpush2.msra.mxu0 0.0
          %483 = vmatprep.subr.mxu0 0.0
          %484 = vmatpush2.msra.mxu0 0.0
          %485 = vmatprep.subr.mxu0 0.0
          %486 = vmatpush2.msra.mxu0 0.0
          %487 = vmatprep.subr.mxu0 0.0
          %488 = vmatpush2.msra.mxu0 0.0
          %489 = vmatprep.subr.mxu0 0.0
          %490 = vmatpush2.msra.mxu0 0.0
          %491 = vmatprep.subr.mxu0 0.0
          %492 = vmatpush2.msra.mxu0 0.0
          %493 = vmatprep.subr.mxu0 0.0
          %494 = vmatpush2.msra.mxu0 0.0
          %495 = vmatprep.subr.mxu0 0.0
          %496 = vmatpush2.msra.mxu0 0.0
          %497 = vmatprep.subr.mxu0 0.0
          %498 = vmatpush2.msra.mxu0 0.0
          %499 = vmatprep.subr.mxu0 0.0
          %500 = vmatpush2.msra.mxu0 0.0
          %501 = vmatprep.mubr.f32.mxu0 0.0
          %502 = vmatmul.mubr.f32.gmra.mxu0 %v432
          %v503 = vpop.f32.mrf.mxu0
          %v504 = vadd.f32 0.0, %v503
          %v505 = vpop.f32.mrf.mxu0
          %506 = vmatprep.mubr.f32.mxu0 0.0
          %507 = vmatmul.mubr.f32.gmra.mxu0 %v435
          %v508 = vpop.f32.mrf.mxu0
          %v509 = vadd.f32 0.0, %v508
          %v510 = vpop.f32.mrf.mxu0
          %511 = vdwg.mxu0
          %s512 = scalar_lea.vmem [#allocation2], 16
          %513 = vst.msk [vmem:[%s512] sm:$0xff] %vm344, %v504
          %514 = vst.msk [vmem:[%s512 + $0x8] sm:$0xff] %vm344, %v509
        $region60: #{tpu_custom_call.1} parent=39 // pred_fallthru
          _
        %v515 = vld [vmem:[#allocation9] sm:$0xff]
        %v516 = vld [vmem:[#allocation9 + $0x8] sm:$0xff]
        %v517 = vld [vmem:[#allocation9 + $0x10] sm:$0xff]
        %v518 = vld [vmem:[#allocation9 + $0x18] sm:$0xff]
        %v519 = vld [vmem:[%s4] sm:$0x1]
        %v520 = vld [vmem:[%s282] sm:$0xff]
        %vm521 = vcmask 261120
        %v523 = vsel %vm521, %v520, 0
        %525 = vmatprep.subr.mxu0 0.0
        %526 = vmatpush1.msra.mxu0 0.0
        %527 = vmatprep.subr.mxu0 0.0
        %528 = vmatpush1.msra.mxu0 0.0
        %529 = vmatprep.subr.mxu0 0.0
        %530 = vmatpush1.msra.mxu0 0.0
        %531 = vmatprep.subr.mxu0 0.0
        %532 = vmatpush1.msra.mxu0 0.0
        %533 = vmatprep.subr.mxu0 0.0
        %534 = vmatpush1.msra.mxu0 0.0
        %535 = vmatprep.subr.mxu0 0.0
        %536 = vmatpush1.msra.mxu0 0.0
        %537 = vmatprep.subr.mxu0 0.0
        %538 = vmatpush1.msra.mxu0 0.0
        %539 = vmatprep.subr.mxu0 0.0
        %540 = vmatpush1.msra.mxu0 0.0
        %541 = vmatprep.subr.mxu0 0.0
        %542 = vmatpush1.msra.mxu0 0.0
        %543 = vmatprep.subr.mxu0 0.0
        %544 = vmatpush1.msra.mxu0 0.0
        %545 = vmatprep.subr.mxu0 0.0
        %546 = vmatpush1.msra.mxu0 0.0
        %547 = vmatprep.subr.mxu0 0.0
        %548 = vmatpush1.msra.mxu0 0.0
        %549 = vmatprep.subr.mxu0 0.0
        %550 = vmatpush1.msra.mxu0 %v518
        %551 = vmatprep.subr.mxu0 0.0
        %552 = vmatpush1.msra.mxu0 %v517
        %553 = vmatprep.subr.mxu0 0.0
        %554 = vmatpush1.msra.mxu0 %v516
        %555 = vmatprep.subr.mxu0 0.0
        %556 = vmatpush1.msra.mxu0 %v515
        %557 = vmatprep.subr.mxu0 0.0
        %558 = vmatpush2.msra.mxu0 0.0
        %559 = vmatprep.subr.mxu0 0.0
        %560 = vmatpush2.msra.mxu0 0.0
        %561 = vmatprep.subr.mxu0 0.0
        %562 = vmatpush2.msra.mxu0 0.0
        %563 = vmatprep.subr.mxu0 0.0
        %564 = vmatpush2.msra.mxu0 0.0
        %565 = vmatprep.subr.mxu0 0.0
        %566 = vmatpush2.msra.mxu0 0.0
        %567 = vmatprep.subr.mxu0 0.0
        %568 = vmatpush2.msra.mxu0 0.0
        %569 = vmatprep.subr.mxu0 0.0
        %570 = vmatpush2.msra.mxu0 0.0
        %571 = vmatprep.subr.mxu0 0.0
        %572 = vmatpush2.msra.mxu0 0.0
        %573 = vmatprep.subr.mxu0 0.0
        %574 = vmatpush2.msra.mxu0 0.0
        %575 = vmatprep.subr.mxu0 0.0
        %576 = vmatpush2.msra.mxu0 0.0
        %577 = vmatprep.subr.mxu0 0.0
        %578 = vmatpush2.msra.mxu0 0.0
        %579 = vmatprep.subr.mxu0 0.0
        %580 = vmatpush2.msra.mxu0 0.0
        %581 = vmatprep.subr.mxu0 0.0
        %582 = vmatpush2.msra.mxu0 0.0
        %583 = vmatprep.subr.mxu0 0.0
        %584 = vmatpush2.msra.mxu0 0.0
        %585 = vmatprep.subr.mxu0 0.0
        %586 = vmatpush2.msra.mxu0 0.0
        %587 = vmatprep.subr.mxu0 0.0
        %588 = vmatpush2.msra.mxu0 0.0
        %589 = vmatprep.mubr.f32.mxu0 0.0
        %590 = vmatmul.mubr.f32.gmra.mxu0 %v523
        %v591 = vpop.f32.mrf.mxu0
        %v592 = vadd.f32 0.0, %v591
        %v593 = vpop.f32.mrf.mxu0
        %594 = vdwg.mxu0
        %v595 = vld [vmem:[#allocation2] sm:$0xff]
        %v596 = vld [vmem:[#allocation2 + $0x8] sm:$0xff]
        %v598 = vcombine.high %v592, %v592
        %v600 = vunpack.c.l.s4 1966171168
        %v601 = vunpack.c.0.s8 %v600
        %v602 = vlaneseq
        %v603 = vshrl.u32 %v602, 7
        %v604 = vsub.s32 %v601, %v603
        %v605 = vrot.slane %v592, %v604
        %v607 = vunpack.c.l.s4 1966171168
        %v608 = vunpack.c.0.s8 %v607
        %v609 = vlaneseq
        %v610 = vshrl.u32 %v609, 7
        %v611 = vsub.s32 %v608, %v610
        %v612 = vrot.slane %v598, %v611
        %v613 = vcombine.high %v605, %v605
        %v614 = vcombine.high %v612, %v612
        %v616 = vunpack.c.l.s4 1966171168
        %v617 = vunpack.c.0.s8 %v616
        %v618 = vlaneseq
        %v619 = vshrl.u32 %v618, 7
        %v620 = vsub.s32 %v617, %v619
        %v621 = vrot.slane %v605, %v620
        %v623 = vunpack.c.l.s4 1966171168
        %v624 = vunpack.c.0.s8 %v623
        %v625 = vlaneseq
        %v626 = vshrl.u32 %v625, 7
        %v627 = vsub.s32 %v624, %v626
        %v628 = vrot.slane %v612, %v627
        %v630 = vunpack.c.l.s4 1966171168
        %v631 = vunpack.c.0.s8 %v630
        %v632 = vlaneseq
        %v633 = vshrl.u32 %v632, 7
        %v634 = vsub.s32 %v631, %v633
        %v635 = vrot.slane %v613, %v634
        %v637 = vunpack.c.l.s4 1966171168
        %v638 = vunpack.c.0.s8 %v637
        %v639 = vlaneseq
        %v640 = vshrl.u32 %v639, 7
        %v641 = vsub.s32 %v638, %v640
        %v642 = vrot.slane %v614, %v641
        %v643 = vcombine.high %v621, %v621
        %v644 = vcombine.high %v628, %v628
        %v645 = vcombine.high %v635, %v635
        %v646 = vcombine.high %v642, %v642
        %v647 = vlaneseq
        %v648 = vshrl.u32 %v647, 7
        %v649 = vsub.s32 0, %v648
        %v650 = vrot.slane %v621, %v649
        %v651 = vlaneseq
        %v652 = vshrl.u32 %v651, 7
        %v653 = vsub.s32 0, %v652
        %v654 = vrot.slane %v635, %v653
        %v655 = vlaneseq
        %v656 = vshrl.u32 %v655, 7
        %v657 = vsub.s32 0, %v656
        %v658 = vrot.slane %v643, %v657
        %v659 = vlaneseq
        %v660 = vshrl.u32 %v659, 7
        %v661 = vsub.s32 0, %v660
        %v662 = vrot.slane %v645, %v661
        %v663 = vlaneseq
        %v664 = vshrl.u32 %v663, 7
        %v665 = vsub.s32 0, %v664
        %v666 = vrot.slane %v628, %v665
        %v667 = vlaneseq
        %v668 = vshrl.u32 %v667, 7
        %v669 = vsub.s32 0, %v668
        %v670 = vrot.slane %v642, %v669
        %v671 = vlaneseq
        %v672 = vshrl.u32 %v671, 7
        %v673 = vsub.s32 0, %v672
        %v674 = vrot.slane %v644, %v673
        %v675 = vlaneseq
        %v676 = vshrl.u32 %v675, 7
        %v677 = vsub.s32 0, %v676
        %v678 = vrot.slane %v646, %v677
        %v687 = vadd.f32 %v595, %v650
        %v688 = vadd.f32 %v596, %v650
        %v689 = vadd.f32 %v595, %v654
        %v690 = vadd.f32 %v596, %v654
        %v691 = vadd.f32 %v595, %v658
        %v692 = vadd.f32 %v596, %v658
        %v693 = vadd.f32 %v595, %v662
        %v694 = vadd.f32 %v596, %v662
        %v695 = vadd.f32 %v595, %v666
        %v696 = vadd.f32 %v596, %v666
        %v697 = vadd.f32 %v595, %v670
        %v698 = vadd.f32 %v596, %v670
        %v699 = vadd.f32 %v595, %v674
        %v700 = vadd.f32 %v596, %v674
        %v701 = vadd.f32 %v595, %v678
        %v702 = vadd.f32 %v596, %v678
        %v703 = vtanh.pop %v687
        %v704 = vtanh.pop %v688
        %v705 = vtanh.pop %v689
        %v706 = vtanh.pop %v690
        %v707 = vtanh.pop %v691
        %v708 = vtanh.pop %v692
        %v709 = vtanh.pop %v693
        %v710 = vtanh.pop %v694
        %v711 = vtanh.pop %v695
        %v712 = vtanh.pop %v696
        %v713 = vtanh.pop %v697
        %v714 = vtanh.pop %v698
        %v715 = vtanh.pop %v699
        %v716 = vtanh.pop %v700
        %v717 = vtanh.pop %v701
        %v718 = vtanh.pop %v702
        %v720 = vlaneseq
        %v721 = vshrl.u32 %v720, 7
        %v722 = vsub.s32 0, %v721
        %v723 = vrot.slane %v519, %v722
        %v725 = vmul.f32 %v703, %v723
        %v726 = vmul.f32 %v704, %v723
        %v727 = vmul.f32 %v705, %v723
        %v728 = vmul.f32 %v706, %v723
        %v729 = vmul.f32 %v707, %v723
        %v730 = vmul.f32 %v708, %v723
        %v731 = vmul.f32 %v709, %v723
        %v732 = vmul.f32 %v710, %v723
        %v733 = vmul.f32 %v711, %v723
        %v734 = vmul.f32 %v712, %v723
        %v735 = vmul.f32 %v713, %v723
        %v736 = vmul.f32 %v714, %v723
        %v737 = vmul.f32 %v715, %v723
        %v738 = vmul.f32 %v716, %v723
        %v739 = vmul.f32 %v717, %v723
        %v740 = vmul.f32 %v718, %v723
        %v741 = vsel %vm521, %v725, 0.0
        %742 = vadd.xlane.f32.xlu0 %v741
        %v743 = vpop.xlane.xlu0 %742
        %v744 = vsel %vm521, %v726, 0.0
        %745 = vadd.xlane.f32.xlu0 %v744
        %v746 = vpop.xlane.xlu0 %745
        %v747 = vsel %vm521, %v727, 0.0
        %748 = vadd.xlane.f32.xlu0 %v747
        %v749 = vpop.xlane.xlu0 %748
        %v750 = vsel %vm521, %v728, 0.0
        %751 = vadd.xlane.f32.xlu0 %v750
        %v752 = vpop.xlane.xlu0 %751
        %v753 = vsel %vm521, %v729, 0.0
        %754 = vadd.xlane.f32.xlu0 %v753
        %v755 = vpop.xlane.xlu0 %754
        %v756 = vsel %vm521, %v730, 0.0
        %757 = vadd.xlane.f32.xlu0 %v756
        %v758 = vpop.xlane.xlu0 %757
        %v759 = vsel %vm521, %v731, 0.0
        %760 = vadd.xlane.f32.xlu0 %v759
        %v761 = vpop.xlane.xlu0 %760
        %v762 = vsel %vm521, %v732, 0.0
        %763 = vadd.xlane.f32.xlu0 %v762
        %v764 = vpop.xlane.xlu0 %763
        %v765 = vsel %vm521, %v733, 0.0
        %766 = vadd.xlane.f32.xlu0 %v765
        %v767 = vpop.xlane.xlu0 %766
        %v768 = vsel %vm521, %v734, 0.0
        %769 = vadd.xlane.f32.xlu0 %v768
        %v770 = vpop.xlane.xlu0 %769
        %v771 = vsel %vm521, %v735, 0.0
        %772 = vadd.xlane.f32.xlu0 %v771
        %v773 = vpop.xlane.xlu0 %772
        %v774 = vsel %vm521, %v736, 0.0
        %775 = vadd.xlane.f32.xlu0 %v774
        %v776 = vpop.xlane.xlu0 %775
        %v777 = vsel %vm521, %v737, 0.0
        %778 = vadd.xlane.f32.xlu0 %v777
        %v779 = vpop.xlane.xlu0 %778
        %v780 = vsel %vm521, %v738, 0.0
        %781 = vadd.xlane.f32.xlu0 %v780
        %v782 = vpop.xlane.xlu0 %781
        %v783 = vsel %vm521, %v739, 0.0
        %784 = vadd.xlane.f32.xlu0 %v783
        %v785 = vpop.xlane.xlu0 %784
        %v786 = vsel %vm521, %v740, 0.0
        %787 = vadd.xlane.f32.xlu0 %v786
        %v788 = vpop.xlane.xlu0 %787
        %v805 = vlaneseq
        %v806 = vand.u32 %v805, 127
        %v807 = vlaneseq
        %v808 = vshrl.u32 %v807, 7
        %v809 = vsub.s32 %v806, %v808
        %v810 = vrot.slane %v743, %v809
        %v811 = vadd.s32 %v806, 4294967288
        %v812 = vlaneseq
        %v813 = vshrl.u32 %v812, 7
        %v814 = vsub.s32 %v811, %v813
        %v815 = vrot.slane %v746, %v814
        %vm816 = vcmask 130112
        %v817 = vsel %vm816, %v815, %v810
        %v818 = vlaneseq
        %v819 = vshrl.u32 %v818, 7
        %v820 = vsub.s32 %v806, %v819
        %v821 = vrot.slane %v749, %v820
        %v822 = vlaneseq
        %v823 = vshrl.u32 %v822, 7
        %v824 = vsub.s32 %v811, %v823
        %v825 = vrot.slane %v752, %v824
        %v826 = vsel %vm816, %v825, %v821
        %v827 = vlaneseq
        %v828 = vshrl.u32 %v827, 7
        %v829 = vsub.s32 %v806, %v828
        %v830 = vrot.slane %v755, %v829
        %v831 = vlaneseq
        %v832 = vshrl.u32 %v831, 7
        %v833 = vsub.s32 %v811, %v832
        %v834 = vrot.slane %v758, %v833
        %v835 = vsel %vm816, %v834, %v830
        %v836 = vlaneseq
        %v837 = vshrl.u32 %v836, 7
        %v838 = vsub.s32 %v806, %v837
        %v839 = vrot.slane %v761, %v838
        %v840 = vlaneseq
        %v841 = vshrl.u32 %v840, 7
        %v842 = vsub.s32 %v811, %v841
        %v843 = vrot.slane %v764, %v842
        %v844 = vsel %vm816, %v843, %v839
        %v845 = vlaneseq
        %v846 = vshrl.u32 %v845, 7
        %v847 = vsub.s32 %v806, %v846
        %v848 = vrot.slane %v767, %v847
        %v849 = vlaneseq
        %v850 = vshrl.u32 %v849, 7
        %v851 = vsub.s32 %v811, %v850
        %v852 = vrot.slane %v770, %v851
        %v853 = vsel %vm816, %v852, %v848
        %v854 = vlaneseq
        %v855 = vshrl.u32 %v854, 7
        %v856 = vsub.s32 %v806, %v855
        %v857 = vrot.slane %v773, %v856
        %v858 = vlaneseq
        %v859 = vshrl.u32 %v858, 7
        %v860 = vsub.s32 %v811, %v859
        %v861 = vrot.slane %v776, %v860
        %v862 = vsel %vm816, %v861, %v857
        %v863 = vlaneseq
        %v864 = vshrl.u32 %v863, 7
        %v865 = vsub.s32 %v806, %v864
        %v866 = vrot.slane %v779, %v865
        %v867 = vlaneseq
        %v868 = vshrl.u32 %v867, 7
        %v869 = vsub.s32 %v811, %v868
        %v870 = vrot.slane %v782, %v869
        %v871 = vsel %vm816, %v870, %v866
        %v872 = vlaneseq
        %v873 = vshrl.u32 %v872, 7
        %v874 = vsub.s32 %v806, %v873
        %v875 = vrot.slane %v785, %v874
        %v876 = vlaneseq
        %v877 = vshrl.u32 %v876, 7
        %v878 = vsub.s32 %v811, %v877
        %v879 = vrot.slane %v788, %v878
        %v880 = vsel %vm816, %v879, %v875
        %vm881 = vcmask 1041409
        %v882 = vsel %vm881, %v826, %v817
        %vm883 = vcmask 1042434
        %v884 = vsel %vm883, %v835, %v882
        %vm885 = vcmask 1043459
        %v886 = vsel %vm885, %v844, %v884
        %vm887 = vcmask 1044484
        %v888 = vsel %vm887, %v853, %v886
        %vm889 = vcmask 1045509
        %v890 = vsel %vm889, %v862, %v888
        %vm891 = vcmask 1046534
        %v892 = vsel %vm891, %v871, %v890
        %vm893 = vcmask 1047559
        %v894 = vsel %vm893, %v880, %v892
        %vm896 = vcmask 130048
        %v897 = vsel %vm896, %v894, -inf
        %898 = vmax.xlane.f32.xlu0 %v897
        %v899 = vpop.xlane.xlu0 %898
        %v901 = vlaneseq
        %v902 = vshrl.u32 %v901, 7
        %v903 = vsub.s32 0, %v902
        %v904 = vrot.slane %v899, %v903
        %v905 = vlaneseq
        %v906 = vshrl.u32 %v905, 7
        %v907 = vsub.s32 1, %v906
        %v908 = vrot.slane %v899, %v907
        %v909 = vlaneseq
        %v910 = vshrl.u32 %v909, 7
        %v911 = vsub.s32 2, %v910
        %v912 = vrot.slane %v899, %v911
        %v913 = vlaneseq
        %v914 = vshrl.u32 %v913, 7
        %v915 = vsub.s32 3, %v914
        %v916 = vrot.slane %v899, %v915
        %v917 = vlaneseq
        %v918 = vshrl.u32 %v917, 7
        %v919 = vsub.s32 4, %v918
        %v920 = vrot.slane %v899, %v919
        %v921 = vlaneseq
        %v922 = vshrl.u32 %v921, 7
        %v923 = vsub.s32 5, %v922
        %v924 = vrot.slane %v899, %v923
        %v925 = vlaneseq
        %v926 = vshrl.u32 %v925, 7
        %v927 = vsub.s32 6, %v926
        %v928 = vrot.slane %v899, %v927
        %v929 = vlaneseq
        %v930 = vshrl.u32 %v929, 7
        %v931 = vsub.s32 7, %v930
        %v932 = vrot.slane %v899, %v931
        %v941 = vsub.f32 %v743, %v904
        %v942 = vsub.f32 %v746, %v904
        %v943 = vsub.f32 %v749, %v908
        %v944 = vsub.f32 %v752, %v908
        %v945 = vsub.f32 %v755, %v912
        %v946 = vsub.f32 %v758, %v912
        %v947 = vsub.f32 %v761, %v916
        %v948 = vsub.f32 %v764, %v916
        %v949 = vsub.f32 %v767, %v920
        %v950 = vsub.f32 %v770, %v920
        %v951 = vsub.f32 %v773, %v924
        %v952 = vsub.f32 %v776, %v924
        %v953 = vsub.f32 %v779, %v928
        %v954 = vsub.f32 %v782, %v928
        %v955 = vsub.f32 %v785, %v932
        %v956 = vsub.f32 %v788, %v932
        %v957 = vmul.f32 %v941, 1.442695
        %v958 = vpow.pop %v957
        %v959 = vmul.f32 %v942, 1.442695
        %v960 = vpow.pop %v959
        %v961 = vmul.f32 %v943, 1.442695
        %v962 = vpow.pop %v961
        %v963 = vmul.f32 %v944, 1.442695
        %v964 = vpow.pop %v963
        %v965 = vmul.f32 %v945, 1.442695
        %v966 = vpow.pop %v965
        %v967 = vmul.f32 %v946, 1.442695
        %v968 = vpow.pop %v967
        %v969 = vmul.f32 %v947, 1.442695
        %v970 = vpow.pop %v969
        %v971 = vmul.f32 %v948, 1.442695
        %v972 = vpow.pop %v971
        %v973 = vmul.f32 %v949, 1.442695
        %v974 = vpow.pop %v973
        %v975 = vmul.f32 %v950, 1.442695
        %v976 = vpow.pop %v975
        %v977 = vmul.f32 %v951, 1.442695
        %v978 = vpow.pop %v977
        %v979 = vmul.f32 %v952, 1.442695
        %v980 = vpow.pop %v979
        %v981 = vmul.f32 %v953, 1.442695
        %v982 = vpow.pop %v981
        %v983 = vmul.f32 %v954, 1.442695
        %v984 = vpow.pop %v983
        %v985 = vmul.f32 %v955, 1.442695
        %v986 = vpow.pop %v985
        %v987 = vmul.f32 %v956, 1.442695
        %v988 = vpow.pop %v987
        %1005 = vset.pattern.permute.xlu0 0
        %1006 = vperm.xlu0 %1005, %v958
        %v1007 = vpop.permute.xlu0 %1006
        %1008 = vset.pattern.permute.xlu0 0
        %1009 = vperm.xlu0 %1008, %v960
        %v1010 = vpop.permute.xlu0 %1009
        %1011 = vset.pattern.permute.xlu0 0
        %1012 = vperm.xlu0 %1011, %v962
        %v1013 = vpop.permute.xlu0 %1012
        %1014 = vset.pattern.permute.xlu0 0
        %1015 = vperm.xlu0 %1014, %v964
        %v1016 = vpop.permute.xlu0 %1015
        %1017 = vset.pattern.permute.xlu0 0
        %1018 = vperm.xlu0 %1017, %v966
        %v1019 = vpop.permute.xlu0 %1018
        %1020 = vset.pattern.permute.xlu0 0
        %1021 = vperm.xlu0 %1020, %v968
        %v1022 = vpop.permute.xlu0 %1021
        %1023 = vset.pattern.permute.xlu0 0
        %1024 = vperm.xlu0 %1023, %v970
        %v1025 = vpop.permute.xlu0 %1024
        %1026 = vset.pattern.permute.xlu0 0
        %1027 = vperm.xlu0 %1026, %v972
        %v1028 = vpop.permute.xlu0 %1027
        %1029 = vset.pattern.permute.xlu0 0
        %1030 = vperm.xlu0 %1029, %v974
        %v1031 = vpop.permute.xlu0 %1030
        %1032 = vset.pattern.permute.xlu0 0
        %1033 = vperm.xlu0 %1032, %v976
        %v1034 = vpop.permute.xlu0 %1033
        %1035 = vset.pattern.permute.xlu0 0
        %1036 = vperm.xlu0 %1035, %v978
        %v1037 = vpop.permute.xlu0 %1036
        %1038 = vset.pattern.permute.xlu0 0
        %1039 = vperm.xlu0 %1038, %v980
        %v1040 = vpop.permute.xlu0 %1039
        %1041 = vset.pattern.permute.xlu0 0
        %1042 = vperm.xlu0 %1041, %v982
        %v1043 = vpop.permute.xlu0 %1042
        %1044 = vset.pattern.permute.xlu0 0
        %1045 = vperm.xlu0 %1044, %v984
        %v1046 = vpop.permute.xlu0 %1045
        %1047 = vset.pattern.permute.xlu0 0
        %1048 = vperm.xlu0 %1047, %v986
        %v1049 = vpop.permute.xlu0 %1048
        %1050 = vset.pattern.permute.xlu0 0
        %1051 = vperm.xlu0 %1050, %v988
        %v1052 = vpop.permute.xlu0 %1051
        %v1053 = vlaneseq
        %v1054 = vshrl.u32 %v1053, 7
        %v1055 = vsub.s32 %v806, %v1054
        %v1056 = vrot.slane %v1007, %v1055
        %v1057 = vlaneseq
        %v1058 = vshrl.u32 %v1057, 7
        %v1059 = vsub.s32 %v811, %v1058
        %v1060 = vrot.slane %v1010, %v1059
        %v1061 = vsel %vm816, %v1060, %v1056
        %v1062 = vlaneseq
        %v1063 = vshrl.u32 %v1062, 7
        %v1064 = vsub.s32 %v806, %v1063
        %v1065 = vrot.slane %v1013, %v1064
        %v1066 = vlaneseq
        %v1067 = vshrl.u32 %v1066, 7
        %v1068 = vsub.s32 %v811, %v1067
        %v1069 = vrot.slane %v1016, %v1068
        %v1070 = vsel %vm816, %v1069, %v1065
        %v1071 = vlaneseq
        %v1072 = vshrl.u32 %v1071, 7
        %v1073 = vsub.s32 %v806, %v1072
        %v1074 = vrot.slane %v1019, %v1073
        %v1075 = vlaneseq
        %v1076 = vshrl.u32 %v1075, 7
        %v1077 = vsub.s32 %v811, %v1076
        %v1078 = vrot.slane %v1022, %v1077
        %v1079 = vsel %vm816, %v1078, %v1074
        %v1080 = vlaneseq
        %v1081 = vshrl.u32 %v1080, 7
        %v1082 = vsub.s32 %v806, %v1081
        %v1083 = vrot.slane %v1025, %v1082
        %v1084 = vlaneseq
        %v1085 = vshrl.u32 %v1084, 7
        %v1086 = vsub.s32 %v811, %v1085
        %v1087 = vrot.slane %v1028, %v1086
        %v1088 = vsel %vm816, %v1087, %v1083
        %v1089 = vlaneseq
        %v1090 = vshrl.u32 %v1089, 7
        %v1091 = vsub.s32 %v806, %v1090
        %v1092 = vrot.slane %v1031, %v1091
        %v1093 = vlaneseq
        %v1094 = vshrl.u32 %v1093, 7
        %v1095 = vsub.s32 %v811, %v1094
        %v1096 = vrot.slane %v1034, %v1095
        %v1097 = vsel %vm816, %v1096, %v1092
        %v1098 = vlaneseq
        %v1099 = vshrl.u32 %v1098, 7
        %v1100 = vsub.s32 %v806, %v1099
        %v1101 = vrot.slane %v1037, %v1100
        %v1102 = vlaneseq
        %v1103 = vshrl.u32 %v1102, 7
        %v1104 = vsub.s32 %v811, %v1103
        %v1105 = vrot.slane %v1040, %v1104
        %v1106 = vsel %vm816, %v1105, %v1101
        %v1107 = vlaneseq
        %v1108 = vshrl.u32 %v1107, 7
        %v1109 = vsub.s32 %v806, %v1108
        %v1110 = vrot.slane %v1043, %v1109
        %v1111 = vlaneseq
        %v1112 = vshrl.u32 %v1111, 7
        %v1113 = vsub.s32 %v811, %v1112
        %v1114 = vrot.slane %v1046, %v1113
        %v1115 = vsel %vm816, %v1114, %v1110
        %v1116 = vlaneseq
        %v1117 = vshrl.u32 %v1116, 7
        %v1118 = vsub.s32 %v806, %v1117
        %v1119 = vrot.slane %v1049, %v1118
        %v1120 = vlaneseq
        %v1121 = vshrl.u32 %v1120, 7
        %v1122 = vsub.s32 %v811, %v1121
        %v1123 = vrot.slane %v1052, %v1122
        %v1124 = vsel %vm816, %v1123, %v1119
        %v1125 = vsel %vm881, %v1070, %v1061
        %v1126 = vsel %vm883, %v1079, %v1125
        %v1127 = vsel %vm885, %v1088, %v1126
        %v1128 = vsel %vm887, %v1097, %v1127
        %v1129 = vsel %vm889, %v1106, %v1128
        %v1130 = vsel %vm891, %v1115, %v1129
        %v1131 = vsel %vm893, %v1124, %v1130
        %v1133 = vsel %vm896, %v1131, 0.0
        %1134 = vadd.xlane.f32.xlu0 %v1133
        %v1135 = vpop.xlane.xlu0 %1134
        %v1136 = vlog2.pop %v1135
        %v1137 = vmul.f32 %v1136, 0.6931472
        %v1138 = vadd.f32 %v1137, %v899
        %v1140 = vlaneseq
        %v1141 = vshrl.u32 %v1140, 7
        %v1142 = vsub.s32 0, %v1141
        %v1143 = vrot.slane %v1138, %v1142
        %v1144 = vlaneseq
        %v1145 = vshrl.u32 %v1144, 7
        %v1146 = vsub.s32 1, %v1145
        %v1147 = vrot.slane %v1138, %v1146
        %v1148 = vlaneseq
        %v1149 = vshrl.u32 %v1148, 7
        %v1150 = vsub.s32 2, %v1149
        %v1151 = vrot.slane %v1138, %v1150
        %v1152 = vlaneseq
        %v1153 = vshrl.u32 %v1152, 7
        %v1154 = vsub.s32 3, %v1153
        %v1155 = vrot.slane %v1138, %v1154
        %v1156 = vlaneseq
        %v1157 = vshrl.u32 %v1156, 7
        %v1158 = vsub.s32 4, %v1157
        %v1159 = vrot.slane %v1138, %v1158
        %v1160 = vlaneseq
        %v1161 = vshrl.u32 %v1160, 7
        %v1162 = vsub.s32 5, %v1161
        %v1163 = vrot.slane %v1138, %v1162
        %v1164 = vlaneseq
        %v1165 = vshrl.u32 %v1164, 7
        %v1166 = vsub.s32 6, %v1165
        %v1167 = vrot.slane %v1138, %v1166
        %v1168 = vlaneseq
        %v1169 = vshrl.u32 %v1168, 7
        %v1170 = vsub.s32 7, %v1169
        %v1171 = vrot.slane %v1138, %v1170
        %v1180 = vsub.f32 %v743, %v1143
        %v1181 = vsub.f32 %v746, %v1143
        %v1182 = vsub.f32 %v749, %v1147
        %v1183 = vsub.f32 %v752, %v1147
        %v1184 = vsub.f32 %v755, %v1151
        %v1185 = vsub.f32 %v758, %v1151
        %v1186 = vsub.f32 %v761, %v1155
        %v1187 = vsub.f32 %v764, %v1155
        %v1188 = vsub.f32 %v767, %v1159
        %v1189 = vsub.f32 %v770, %v1159
        %v1190 = vsub.f32 %v773, %v1163
        %v1191 = vsub.f32 %v776, %v1163
        %v1192 = vsub.f32 %v779, %v1167
        %v1193 = vsub.f32 %v782, %v1167
        %v1194 = vsub.f32 %v785, %v1171
        %v1195 = vsub.f32 %v788, %v1171
        %1212 = vset.pattern.permute.xlu0 0
        %1213 = vperm.xlu0 %1212, %v1180
        %v1214 = vpop.permute.xlu0 %1213
        %1215 = vset.pattern.permute.xlu0 0
        %1216 = vperm.xlu0 %1215, %v1181
        %v1217 = vpop.permute.xlu0 %1216
        %1218 = vset.pattern.permute.xlu0 0
        %1219 = vperm.xlu0 %1218, %v1182
        %v1220 = vpop.permute.xlu0 %1219
        %1221 = vset.pattern.permute.xlu0 0
        %1222 = vperm.xlu0 %1221, %v1183
        %v1223 = vpop.permute.xlu0 %1222
        %1224 = vset.pattern.permute.xlu0 0
        %1225 = vperm.xlu0 %1224, %v1184
        %v1226 = vpop.permute.xlu0 %1225
        %1227 = vset.pattern.permute.xlu0 0
        %1228 = vperm.xlu0 %1227, %v1185
        %v1229 = vpop.permute.xlu0 %1228
        %1230 = vset.pattern.permute.xlu0 0
        %1231 = vperm.xlu0 %1230, %v1186
        %v1232 = vpop.permute.xlu0 %1231
        %1233 = vset.pattern.permute.xlu0 0
        %1234 = vperm.xlu0 %1233, %v1187
        %v1235 = vpop.permute.xlu0 %1234
        %1236 = vset.pattern.permute.xlu0 0
        %1237 = vperm.xlu0 %1236, %v1188
        %v1238 = vpop.permute.xlu0 %1237
        %1239 = vset.pattern.permute.xlu0 0
        %1240 = vperm.xlu0 %1239, %v1189
        %v1241 = vpop.permute.xlu0 %1240
        %1242 = vset.pattern.permute.xlu0 0
        %1243 = vperm.xlu0 %1242, %v1190
        %v1244 = vpop.permute.xlu0 %1243
        %1245 = vset.pattern.permute.xlu0 0
        %1246 = vperm.xlu0 %1245, %v1191
        %v1247 = vpop.permute.xlu0 %1246
        %1248 = vset.pattern.permute.xlu0 0
        %1249 = vperm.xlu0 %1248, %v1192
        %v1250 = vpop.permute.xlu0 %1249
        %1251 = vset.pattern.permute.xlu0 0
        %1252 = vperm.xlu0 %1251, %v1193
        %v1253 = vpop.permute.xlu0 %1252
        %1254 = vset.pattern.permute.xlu0 0
        %1255 = vperm.xlu0 %1254, %v1194
        %v1256 = vpop.permute.xlu0 %1255
        %1257 = vset.pattern.permute.xlu0 0
        %1258 = vperm.xlu0 %1257, %v1195
        %v1259 = vpop.permute.xlu0 %1258
        %v1260 = vlaneseq
        %v1261 = vshrl.u32 %v1260, 7
        %v1262 = vsub.s32 %v806, %v1261
        %v1263 = vrot.slane %v1214, %v1262
        %v1264 = vlaneseq
        %v1265 = vshrl.u32 %v1264, 7
        %v1266 = vsub.s32 %v811, %v1265
        %v1267 = vrot.slane %v1217, %v1266
        %v1268 = vsel %vm816, %v1267, %v1263
        %v1269 = vlaneseq
        %v1270 = vshrl.u32 %v1269, 7
        %v1271 = vsub.s32 %v806, %v1270
        %v1272 = vrot.slane %v1220, %v1271
        %v1273 = vlaneseq
        %v1274 = vshrl.u32 %v1273, 7
        %v1275 = vsub.s32 %v811, %v1274
        %v1276 = vrot.slane %v1223, %v1275
        %v1277 = vsel %vm816, %v1276, %v1272
        %v1278 = vlaneseq
        %v1279 = vshrl.u32 %v1278, 7
        %v1280 = vsub.s32 %v806, %v1279
        %v1281 = vrot.slane %v1226, %v1280
        %v1282 = vlaneseq
        %v1283 = vshrl.u32 %v1282, 7
        %v1284 = vsub.s32 %v811, %v1283
        %v1285 = vrot.slane %v1229, %v1284
        %v1286 = vsel %vm816, %v1285, %v1281
        %v1287 = vlaneseq
        %v1288 = vshrl.u32 %v1287, 7
        %v1289 = vsub.s32 %v806, %v1288
        %v1290 = vrot.slane %v1232, %v1289
        %v1291 = vlaneseq
        %v1292 = vshrl.u32 %v1291, 7
        %v1293 = vsub.s32 %v811, %v1292
        %v1294 = vrot.slane %v1235, %v1293
        %v1295 = vsel %vm816, %v1294, %v1290
        %v1296 = vlaneseq
        %v1297 = vshrl.u32 %v1296, 7
        %v1298 = vsub.s32 %v806, %v1297
        %v1299 = vrot.slane %v1238, %v1298
        %v1300 = vlaneseq
        %v1301 = vshrl.u32 %v1300, 7
        %v1302 = vsub.s32 %v811, %v1301
        %v1303 = vrot.slane %v1241, %v1302
        %v1304 = vsel %vm816, %v1303, %v1299
        %v1305 = vlaneseq
        %v1306 = vshrl.u32 %v1305, 7
        %v1307 = vsub.s32 %v806, %v1306
        %v1308 = vrot.slane %v1244, %v1307
        %v1309 = vlaneseq
        %v1310 = vshrl.u32 %v1309, 7
        %v1311 = vsub.s32 %v811, %v1310
        %v1312 = vrot.slane %v1247, %v1311
        %v1313 = vsel %vm816, %v1312, %v1308
        %v1314 = vlaneseq
        %v1315 = vshrl.u32 %v1314, 7
        %v1316 = vsub.s32 %v806, %v1315
        %v1317 = vrot.slane %v1250, %v1316
        %v1318 = vlaneseq
        %v1319 = vshrl.u32 %v1318, 7
        %v1320 = vsub.s32 %v811, %v1319
        %v1321 = vrot.slane %v1253, %v1320
        %v1322 = vsel %vm816, %v1321, %v1317
        %v1323 = vlaneseq
        %v1324 = vshrl.u32 %v1323, 7
        %v1325 = vsub.s32 %v806, %v1324
        %v1326 = vrot.slane %v1256, %v1325
        %v1327 = vlaneseq
        %v1328 = vshrl.u32 %v1327, 7
        %v1329 = vsub.s32 %v811, %v1328
        %v1330 = vrot.slane %v1259, %v1329
        %v1331 = vsel %vm816, %v1330, %v1326
        %v1332 = vsel %vm881, %v1277, %v1268
        %v1333 = vsel %vm883, %v1286, %v1332
        %v1334 = vsel %vm885, %v1295, %v1333
        %v1335 = vsel %vm887, %v1304, %v1334
        %v1336 = vsel %vm889, %v1313, %v1335
        %v1337 = vsel %vm891, %v1322, %v1336
        %v1338 = vsel %vm893, %v1331, %v1337
        %1340 = vst.msk [vmem:[%s330] sm:$0xff] %vm896, %v1338
        %s1341 = scalar_lea.vmem %s282, 8 [#allocation3]
        %v1342 = vld [vmem:[%s1341] sm:$0xff]
        %v1344 = vsel %vm521, %v1342, 0
        %1346 = vmatprep.subr.mxu0 0.0
        %1347 = vmatpush1.msra.mxu0 0.0
        %1348 = vmatprep.subr.mxu0 0.0
        %1349 = vmatpush1.msra.mxu0 0.0
        %1350 = vmatprep.subr.mxu0 0.0
        %1351 = vmatpush1.msra.mxu0 0.0
        %1352 = vmatprep.subr.mxu0 0.0
        %1353 = vmatpush1.msra.mxu0 0.0
        %1354 = vmatprep.subr.mxu0 0.0
        %1355 = vmatpush1.msra.mxu0 0.0
        %1356 = vmatprep.subr.mxu0 0.0
        %1357 = vmatpush1.msra.mxu0 0.0
        %1358 = vmatprep.subr.mxu0 0.0
        %1359 = vmatpush1.msra.mxu0 0.0
        %1360 = vmatprep.subr.mxu0 0.0
        %1361 = vmatpush1.msra.mxu0 0.0
        %1362 = vmatprep.subr.mxu0 0.0
        %1363 = vmatpush1.msra.mxu0 0.0
        %1364 = vmatprep.subr.mxu0 0.0
        %1365 = vmatpush1.msra.mxu0 0.0
        %1366 = vmatprep.subr.mxu0 0.0
        %1367 = vmatpush1.msra.mxu0 0.0
        %1368 = vmatprep.subr.mxu0 0.0
        %1369 = vmatpush1.msra.mxu0 0.0
        %1370 = vmatprep.subr.mxu0 0.0
        %1371 = vmatpush1.msra.mxu0 %v518
        %1372 = vmatprep.subr.mxu0 0.0
        %1373 = vmatpush1.msra.mxu0 %v517
        %1374 = vmatprep.subr.mxu0 0.0
        %1375 = vmatpush1.msra.mxu0 %v516
        %1376 = vmatprep.subr.mxu0 0.0
        %1377 = vmatpush1.msra.mxu0 %v515
        %1378 = vmatprep.subr.mxu0 0.0
        %1379 = vmatpush2.msra.mxu0 0.0
        %1380 = vmatprep.subr.mxu0 0.0
        %1381 = vmatpush2.msra.mxu0 0.0
        %1382 = vmatprep.subr.mxu0 0.0
        %1383 = vmatpush2.msra.mxu0 0.0
        %1384 = vmatprep.subr.mxu0 0.0
        %1385 = vmatpush2.msra.mxu0 0.0
        %1386 = vmatprep.subr.mxu0 0.0
        %1387 = vmatpush2.msra.mxu0 0.0
        %1388 = vmatprep.subr.mxu0 0.0
        %1389 = vmatpush2.msra.mxu0 0.0
        %1390 = vmatprep.subr.mxu0 0.0
        %1391 = vmatpush2.msra.mxu0 0.0
        %1392 = vmatprep.subr.mxu0 0.0
        %1393 = vmatpush2.msra.mxu0 0.0
        %1394 = vmatprep.subr.mxu0 0.0
        %1395 = vmatpush2.msra.mxu0 0.0
        %1396 = vmatprep.subr.mxu0 0.0
        %1397 = vmatpush2.msra.mxu0 0.0
        %1398 = vmatprep.subr.mxu0 0.0
        %1399 = vmatpush2.msra.mxu0 0.0
        %1400 = vmatprep.subr.mxu0 0.0
        %1401 = vmatpush2.msra.mxu0 0.0
        %1402 = vmatprep.subr.mxu0 0.0
        %1403 = vmatpush2.msra.mxu0 0.0
        %1404 = vmatprep.subr.mxu0 0.0
        %1405 = vmatpush2.msra.mxu0 0.0
        %1406 = vmatprep.subr.mxu0 0.0
        %1407 = vmatpush2.msra.mxu0 0.0
        %1408 = vmatprep.subr.mxu0 0.0
        %1409 = vmatpush2.msra.mxu0 0.0
        %1410 = vmatprep.mubr.f32.mxu0 0.0
        %1411 = vmatmul.mubr.f32.gmra.mxu0 %v1344
        %v1412 = vpop.f32.mrf.mxu0
        %v1413 = vadd.f32 0.0, %v1412
        %v1414 = vpop.f32.mrf.mxu0
        %1415 = vdwg.mxu0
        %s1416 = scalar_lea.vmem [#allocation2], 16
        %v1417 = vld [vmem:[%s1416] sm:$0xff]
        %v1418 = vld [vmem:[%s1416 + $0x8] sm:$0xff]
        %v1420 = vcombine.high %v1413, %v1413
        %v1422 = vunpack.c.l.s4 1966171168
        %v1423 = vunpack.c.0.s8 %v1422
        %v1424 = vlaneseq
        %v1425 = vshrl.u32 %v1424, 7
        %v1426 = vsub.s32 %v1423, %v1425
        %v1427 = vrot.slane %v1413, %v1426
        %v1429 = vunpack.c.l.s4 1966171168
        %v1430 = vunpack.c.0.s8 %v1429
        %v1431 = vlaneseq
        %v1432 = vshrl.u32 %v1431, 7
        %v1433 = vsub.s32 %v1430, %v1432
        %v1434 = vrot.slane %v1420, %v1433
        %v1435 = vcombine.high %v1427, %v1427
        %v1436 = vcombine.high %v1434, %v1434
        %v1438 = vunpack.c.l.s4 1966171168
        %v1439 = vunpack.c.0.s8 %v1438
        %v1440 = vlaneseq
        %v1441 = vshrl.u32 %v1440, 7
        %v1442 = vsub.s32 %v1439, %v1441
        %v1443 = vrot.slane %v1427, %v1442
        %v1445 = vunpack.c.l.s4 1966171168
        %v1446 = vunpack.c.0.s8 %v1445
        %v1447 = vlaneseq
        %v1448 = vshrl.u32 %v1447, 7
        %v1449 = vsub.s32 %v1446, %v1448
        %v1450 = vrot.slane %v1434, %v1449
        %v1452 = vunpack.c.l.s4 1966171168
        %v1453 = vunpack.c.0.s8 %v1452
        %v1454 = vlaneseq
        %v1455 = vshrl.u32 %v1454, 7
        %v1456 = vsub.s32 %v1453, %v1455
        %v1457 = vrot.slane %v1435, %v1456
        %v1459 = vunpack.c.l.s4 1966171168
        %v1460 = vunpack.c.0.s8 %v1459
        %v1461 = vlaneseq
        %v1462 = vshrl.u32 %v1461, 7
        %v1463 = vsub.s32 %v1460, %v1462
        %v1464 = vrot.slane %v1436, %v1463
        %v1465 = vcombine.high %v1443, %v1443
        %v1466 = vcombine.high %v1450, %v1450
        %v1467 = vcombine.high %v1457, %v1457
        %v1468 = vcombine.high %v1464, %v1464
        %v1469 = vlaneseq
        %v1470 = vshrl.u32 %v1469, 7
        %v1471 = vsub.s32 0, %v1470
        %v1472 = vrot.slane %v1443, %v1471
        %v1473 = vlaneseq
        %v1474 = vshrl.u32 %v1473, 7
        %v1475 = vsub.s32 0, %v1474
        %v1476 = vrot.slane %v1457, %v1475
        %v1477 = vlaneseq
        %v1478 = vshrl.u32 %v1477, 7
        %v1479 = vsub.s32 0, %v1478
        %v1480 = vrot.slane %v1465, %v1479
        %v1481 = vlaneseq
        %v1482 = vshrl.u32 %v1481, 7
        %v1483 = vsub.s32 0, %v1482
        %v1484 = vrot.slane %v1467, %v1483
        %v1485 = vlaneseq
        %v1486 = vshrl.u32 %v1485, 7
        %v1487 = vsub.s32 0, %v1486
        %v1488 = vrot.slane %v1450, %v1487
        %v1489 = vlaneseq
        %v1490 = vshrl.u32 %v1489, 7
        %v1491 = vsub.s32 0, %v1490
        %v1492 = vrot.slane %v1464, %v1491
        %v1493 = vlaneseq
        %v1494 = vshrl.u32 %v1493, 7
        %v1495 = vsub.s32 0, %v1494
        %v1496 = vrot.slane %v1466, %v1495
        %v1497 = vlaneseq
        %v1498 = vshrl.u32 %v1497, 7
        %v1499 = vsub.s32 0, %v1498
        %v1500 = vrot.slane %v1468, %v1499
        %v1509 = vadd.f32 %v1417, %v1472
        %v1510 = vadd.f32 %v1418, %v1472
        %v1511 = vadd.f32 %v1417, %v1476
        %v1512 = vadd.f32 %v1418, %v1476
        %v1513 = vadd.f32 %v1417, %v1480
        %v1514 = vadd.f32 %v1418, %v1480
        %v1515 = vadd.f32 %v1417, %v1484
        %v1516 = vadd.f32 %v1418, %v1484
        %v1517 = vadd.f32 %v1417, %v1488
        %v1518 = vadd.f32 %v1418, %v1488
        %v1519 = vadd.f32 %v1417, %v1492
        %v1520 = vadd.f32 %v1418, %v1492
        %v1521 = vadd.f32 %v1417, %v1496
        %v1522 = vadd.f32 %v1418, %v1496
        %v1523 = vadd.f32 %v1417, %v1500
        %v1524 = vadd.f32 %v1418, %v1500
        %v1525 = vtanh.pop %v1509
        %v1526 = vtanh.pop %v1510
        %v1527 = vtanh.pop %v1511
        %v1528 = vtanh.pop %v1512
        %v1529 = vtanh.pop %v1513
        %v1530 = vtanh.pop %v1514
        %v1531 = vtanh.pop %v1515
        %v1532 = vtanh.pop %v1516
        %v1533 = vtanh.pop %v1517
        %v1534 = vtanh.pop %v1518
        %v1535 = vtanh.pop %v1519
        %v1536 = vtanh.pop %v1520
        %v1537 = vtanh.pop %v1521
        %v1538 = vtanh.pop %v1522
        %v1539 = vtanh.pop %v1523
        %v1540 = vtanh.pop %v1524
        %v1541 = vmul.f32 %v1525, %v723
        %v1542 = vmul.f32 %v1526, %v723
        %v1543 = vmul.f32 %v1527, %v723
        %v1544 = vmul.f32 %v1528, %v723
        %v1545 = vmul.f32 %v1529, %v723
        %v1546 = vmul.f32 %v1530, %v723
        %v1547 = vmul.f32 %v1531, %v723
        %v1548 = vmul.f32 %v1532, %v723
        %v1549 = vmul.f32 %v1533, %v723
        %v1550 = vmul.f32 %v1534, %v723
        %v1551 = vmul.f32 %v1535, %v723
        %v1552 = vmul.f32 %v1536, %v723
        %v1553 = vmul.f32 %v1537, %v723
        %v1554 = vmul.f32 %v1538, %v723
        %v1555 = vmul.f32 %v1539, %v723
        %v1556 = vmul.f32 %v1540, %v723
        %v1557 = vsel %vm521, %v1541, 0.0
        %1558 = vadd.xlane.f32.xlu0 %v1557
        %v1559 = vpop.xlane.xlu0 %1558
        %v1560 = vsel %vm521, %v1542, 0.0
        %1561 = vadd.xlane.f32.xlu0 %v1560
        %v1562 = vpop.xlane.xlu0 %1561
        %v1563 = vsel %vm521, %v1543, 0.0
        %1564 = vadd.xlane.f32.xlu0 %v1563
        %v1565 = vpop.xlane.xlu0 %1564
        %v1566 = vsel %vm521, %v1544, 0.0
        %1567 = vadd.xlane.f32.xlu0 %v1566
        %v1568 = vpop.xlane.xlu0 %1567
        %v1569 = vsel %vm521, %v1545, 0.0
        %1570 = vadd.xlane.f32.xlu0 %v1569
        %v1571 = vpop.xlane.xlu0 %1570
        %v1572 = vsel %vm521, %v1546, 0.0
        %1573 = vadd.xlane.f32.xlu0 %v1572
        %v1574 = vpop.xlane.xlu0 %1573
        %v1575 = vsel %vm521, %v1547, 0.0
        %1576 = vadd.xlane.f32.xlu0 %v1575
        %v1577 = vpop.xlane.xlu0 %1576
        %v1578 = vsel %vm521, %v1548, 0.0
        %1579 = vadd.xlane.f32.xlu0 %v1578
        %v1580 = vpop.xlane.xlu0 %1579
        %v1581 = vsel %vm521, %v1549, 0.0
        %1582 = vadd.xlane.f32.xlu0 %v1581
        %v1583 = vpop.xlane.xlu0 %1582
        %v1584 = vsel %vm521, %v1550, 0.0
        %1585 = vadd.xlane.f32.xlu0 %v1584
        %v1586 = vpop.xlane.xlu0 %1585
        %v1587 = vsel %vm521, %v1551, 0.0
        %1588 = vadd.xlane.f32.xlu0 %v1587
        %v1589 = vpop.xlane.xlu0 %1588
        %v1590 = vsel %vm521, %v1552, 0.0
        %1591 = vadd.xlane.f32.xlu0 %v1590
        %v1592 = vpop.xlane.xlu0 %1591
        %v1593 = vsel %vm521, %v1553, 0.0
        %1594 = vadd.xlane.f32.xlu0 %v1593
        %v1595 = vpop.xlane.xlu0 %1594
        %v1596 = vsel %vm521, %v1554, 0.0
        %1597 = vadd.xlane.f32.xlu0 %v1596
        %v1598 = vpop.xlane.xlu0 %1597
        %v1599 = vsel %vm521, %v1555, 0.0
        %1600 = vadd.xlane.f32.xlu0 %v1599
        %v1601 = vpop.xlane.xlu0 %1600
        %v1602 = vsel %vm521, %v1556, 0.0
        %1603 = vadd.xlane.f32.xlu0 %v1602
        %v1604 = vpop.xlane.xlu0 %1603
        %v1621 = vlaneseq
        %v1622 = vshrl.u32 %v1621, 7
        %v1623 = vsub.s32 %v806, %v1622
        %v1624 = vrot.slane %v1559, %v1623
        %v1625 = vlaneseq
        %v1626 = vshrl.u32 %v1625, 7
        %v1627 = vsub.s32 %v811, %v1626
        %v1628 = vrot.slane %v1562, %v1627
        %v1629 = vsel %vm816, %v1628, %v1624
        %v1630 = vlaneseq
        %v1631 = vshrl.u32 %v1630, 7
        %v1632 = vsub.s32 %v806, %v1631
        %v1633 = vrot.slane %v1565, %v1632
        %v1634 = vlaneseq
        %v1635 = vshrl.u32 %v1634, 7
        %v1636 = vsub.s32 %v811, %v1635
        %v1637 = vrot.slane %v1568, %v1636
        %v1638 = vsel %vm816, %v1637, %v1633
        %v1639 = vlaneseq
        %v1640 = vshrl.u32 %v1639, 7
        %v1641 = vsub.s32 %v806, %v1640
        %v1642 = vrot.slane %v1571, %v1641
        %v1643 = vlaneseq
        %v1644 = vshrl.u32 %v1643, 7
        %v1645 = vsub.s32 %v811, %v1644
        %v1646 = vrot.slane %v1574, %v1645
        %v1647 = vsel %vm816, %v1646, %v1642
        %v1648 = vlaneseq
        %v1649 = vshrl.u32 %v1648, 7
        %v1650 = vsub.s32 %v806, %v1649
        %v1651 = vrot.slane %v1577, %v1650
        %v1652 = vlaneseq
        %v1653 = vshrl.u32 %v1652, 7
        %v1654 = vsub.s32 %v811, %v1653
        %v1655 = vrot.slane %v1580, %v1654
        %v1656 = vsel %vm816, %v1655, %v1651
        %v1657 = vlaneseq
        %v1658 = vshrl.u32 %v1657, 7
        %v1659 = vsub.s32 %v806, %v1658
        %v1660 = vrot.slane %v1583, %v1659
        %v1661 = vlaneseq
        %v1662 = vshrl.u32 %v1661, 7
        %v1663 = vsub.s32 %v811, %v1662
        %v1664 = vrot.slane %v1586, %v1663
        %v1665 = vsel %vm816, %v1664, %v1660
        %v1666 = vlaneseq
        %v1667 = vshrl.u32 %v1666, 7
        %v1668 = vsub.s32 %v806, %v1667
        %v1669 = vrot.slane %v1589, %v1668
        %v1670 = vlaneseq
        %v1671 = vshrl.u32 %v1670, 7
        %v1672 = vsub.s32 %v811, %v1671
        %v1673 = vrot.slane %v1592, %v1672
        %v1674 = vsel %vm816, %v1673, %v1669
        %v1675 = vlaneseq
        %v1676 = vshrl.u32 %v1675, 7
        %v1677 = vsub.s32 %v806, %v1676
        %v1678 = vrot.slane %v1595, %v1677
        %v1679 = vlaneseq
        %v1680 = vshrl.u32 %v1679, 7
        %v1681 = vsub.s32 %v811, %v1680
        %v1682 = vrot.slane %v1598, %v1681
        %v1683 = vsel %vm816, %v1682, %v1678
        %v1684 = vlaneseq
        %v1685 = vshrl.u32 %v1684, 7
        %v1686 = vsub.s32 %v806, %v1685
        %v1687 = vrot.slane %v1601, %v1686
        %v1688 = vlaneseq
        %v1689 = vshrl.u32 %v1688, 7
        %v1690 = vsub.s32 %v811, %v1689
        %v1691 = vrot.slane %v1604, %v1690
        %v1692 = vsel %vm816, %v1691, %v1687
        %v1693 = vsel %vm881, %v1638, %v1629
        %v1694 = vsel %vm883, %v1647, %v1693
        %v1695 = vsel %vm885, %v1656, %v1694
        %v1696 = vsel %vm887, %v1665, %v1695
        %v1697 = vsel %vm889, %v1674, %v1696
        %v1698 = vsel %vm891, %v1683, %v1697
        %v1699 = vsel %vm893, %v1692, %v1698
        %v1701 = vsel %vm896, %v1699, -inf
        %1702 = vmax.xlane.f32.xlu0 %v1701
        %v1703 = vpop.xlane.xlu0 %1702
        %v1705 = vlaneseq
        %v1706 = vshrl.u32 %v1705, 7
        %v1707 = vsub.s32 0, %v1706
        %v1708 = vrot.slane %v1703, %v1707
        %v1709 = vlaneseq
        %v1710 = vshrl.u32 %v1709, 7
        %v1711 = vsub.s32 1, %v1710
        %v1712 = vrot.slane %v1703, %v1711
        %v1713 = vlaneseq
        %v1714 = vshrl.u32 %v1713, 7
        %v1715 = vsub.s32 2, %v1714
        %v1716 = vrot.slane %v1703, %v1715
        %v1717 = vlaneseq
        %v1718 = vshrl.u32 %v1717, 7
        %v1719 = vsub.s32 3, %v1718
        %v1720 = vrot.slane %v1703, %v1719
        %v1721 = vlaneseq
        %v1722 = vshrl.u32 %v1721, 7
        %v1723 = vsub.s32 4, %v1722
        %v1724 = vrot.slane %v1703, %v1723
        %v1725 = vlaneseq
        %v1726 = vshrl.u32 %v1725, 7
        %v1727 = vsub.s32 5, %v1726
        %v1728 = vrot.slane %v1703, %v1727
        %v1729 = vlaneseq
        %v1730 = vshrl.u32 %v1729, 7
        %v1731 = vsub.s32 6, %v1730
        %v1732 = vrot.slane %v1703, %v1731
        %v1733 = vlaneseq
        %v1734 = vshrl.u32 %v1733, 7
        %v1735 = vsub.s32 7, %v1734
        %v1736 = vrot.slane %v1703, %v1735
        %v1745 = vsub.f32 %v1559, %v1708
        %v1746 = vsub.f32 %v1562, %v1708
        %v1747 = vsub.f32 %v1565, %v1712
        %v1748 = vsub.f32 %v1568, %v1712
        %v1749 = vsub.f32 %v1571, %v1716
        %v1750 = vsub.f32 %v1574, %v1716
        %v1751 = vsub.f32 %v1577, %v1720
        %v1752 = vsub.f32 %v1580, %v1720
        %v1753 = vsub.f32 %v1583, %v1724
        %v1754 = vsub.f32 %v1586, %v1724
        %v1755 = vsub.f32 %v1589, %v1728
        %v1756 = vsub.f32 %v1592, %v1728
        %v1757 = vsub.f32 %v1595, %v1732
        %v1758 = vsub.f32 %v1598, %v1732
        %v1759 = vsub.f32 %v1601, %v1736
        %v1760 = vsub.f32 %v1604, %v1736
        %v1761 = vmul.f32 %v1745, 1.442695
        %v1762 = vpow.pop %v1761
        %v1763 = vmul.f32 %v1746, 1.442695
        %v1764 = vpow.pop %v1763
        %v1765 = vmul.f32 %v1747, 1.442695
        %v1766 = vpow.pop %v1765
        %v1767 = vmul.f32 %v1748, 1.442695
        %v1768 = vpow.pop %v1767
        %v1769 = vmul.f32 %v1749, 1.442695
        %v1770 = vpow.pop %v1769
        %v1771 = vmul.f32 %v1750, 1.442695
        %v1772 = vpow.pop %v1771
        %v1773 = vmul.f32 %v1751, 1.442695
        %v1774 = vpow.pop %v1773
        %v1775 = vmul.f32 %v1752, 1.442695
        %v1776 = vpow.pop %v1775
        %v1777 = vmul.f32 %v1753, 1.442695
        %v1778 = vpow.pop %v1777
        %v1779 = vmul.f32 %v1754, 1.442695
        %v1780 = vpow.pop %v1779
        %v1781 = vmul.f32 %v1755, 1.442695
        %v1782 = vpow.pop %v1781
        %v1783 = vmul.f32 %v1756, 1.442695
        %v1784 = vpow.pop %v1783
        %v1785 = vmul.f32 %v1757, 1.442695
        %v1786 = vpow.pop %v1785
        %v1787 = vmul.f32 %v1758, 1.442695
        %v1788 = vpow.pop %v1787
        %v1789 = vmul.f32 %v1759, 1.442695
        %v1790 = vpow.pop %v1789
        %v1791 = vmul.f32 %v1760, 1.442695
        %v1792 = vpow.pop %v1791
        %1809 = vset.pattern.permute.xlu0 0
        %1810 = vperm.xlu0 %1809, %v1762
        %v1811 = vpop.permute.xlu0 %1810
        %1812 = vset.pattern.permute.xlu0 0
        %1813 = vperm.xlu0 %1812, %v1764
        %v1814 = vpop.permute.xlu0 %1813
        %1815 = vset.pattern.permute.xlu0 0
        %1816 = vperm.xlu0 %1815, %v1766
        %v1817 = vpop.permute.xlu0 %1816
        %1818 = vset.pattern.permute.xlu0 0
        %1819 = vperm.xlu0 %1818, %v1768
        %v1820 = vpop.permute.xlu0 %1819
        %1821 = vset.pattern.permute.xlu0 0
        %1822 = vperm.xlu0 %1821, %v1770
        %v1823 = vpop.permute.xlu0 %1822
        %1824 = vset.pattern.permute.xlu0 0
        %1825 = vperm.xlu0 %1824, %v1772
        %v1826 = vpop.permute.xlu0 %1825
        %1827 = vset.pattern.permute.xlu0 0
        %1828 = vperm.xlu0 %1827, %v1774
        %v1829 = vpop.permute.xlu0 %1828
        %1830 = vset.pattern.permute.xlu0 0
        %1831 = vperm.xlu0 %1830, %v1776
        %v1832 = vpop.permute.xlu0 %1831
        %1833 = vset.pattern.permute.xlu0 0
        %1834 = vperm.xlu0 %1833, %v1778
        %v1835 = vpop.permute.xlu0 %1834
        %1836 = vset.pattern.permute.xlu0 0
        %1837 = vperm.xlu0 %1836, %v1780
        %v1838 = vpop.permute.xlu0 %1837
        %1839 = vset.pattern.permute.xlu0 0
        %1840 = vperm.xlu0 %1839, %v1782
        %v1841 = vpop.permute.xlu0 %1840
        %1842 = vset.pattern.permute.xlu0 0
        %1843 = vperm.xlu0 %1842, %v1784
        %v1844 = vpop.permute.xlu0 %1843
        %1845 = vset.pattern.permute.xlu0 0
        %1846 = vperm.xlu0 %1845, %v1786
        %v1847 = vpop.permute.xlu0 %1846
        %1848 = vset.pattern.permute.xlu0 0
        %1849 = vperm.xlu0 %1848, %v1788
        %v1850 = vpop.permute.xlu0 %1849
        %1851 = vset.pattern.permute.xlu0 0
        %1852 = vperm.xlu0 %1851, %v1790
        %v1853 = vpop.permute.xlu0 %1852
        %1854 = vset.pattern.permute.xlu0 0
        %1855 = vperm.xlu0 %1854, %v1792
        %v1856 = vpop.permute.xlu0 %1855
        %v1857 = vlaneseq
        %v1858 = vshrl.u32 %v1857, 7
        %v1859 = vsub.s32 %v806, %v1858
        %v1860 = vrot.slane %v1811, %v1859
        %v1861 = vlaneseq
        %v1862 = vshrl.u32 %v1861, 7
        %v1863 = vsub.s32 %v811, %v1862
        %v1864 = vrot.slane %v1814, %v1863
        %v1865 = vsel %vm816, %v1864, %v1860
        %v1866 = vlaneseq
        %v1867 = vshrl.u32 %v1866, 7
        %v1868 = vsub.s32 %v806, %v1867
        %v1869 = vrot.slane %v1817, %v1868
        %v1870 = vlaneseq
        %v1871 = vshrl.u32 %v1870, 7
        %v1872 = vsub.s32 %v811, %v1871
        %v1873 = vrot.slane %v1820, %v1872
        %v1874 = vsel %vm816, %v1873, %v1869
        %v1875 = vlaneseq
        %v1876 = vshrl.u32 %v1875, 7
        %v1877 = vsub.s32 %v806, %v1876
        %v1878 = vrot.slane %v1823, %v1877
        %v1879 = vlaneseq
        %v1880 = vshrl.u32 %v1879, 7
        %v1881 = vsub.s32 %v811, %v1880
        %v1882 = vrot.slane %v1826, %v1881
        %v1883 = vsel %vm816, %v1882, %v1878
        %v1884 = vlaneseq
        %v1885 = vshrl.u32 %v1884, 7
        %v1886 = vsub.s32 %v806, %v1885
        %v1887 = vrot.slane %v1829, %v1886
        %v1888 = vlaneseq
        %v1889 = vshrl.u32 %v1888, 7
        %v1890 = vsub.s32 %v811, %v1889
        %v1891 = vrot.slane %v1832, %v1890
        %v1892 = vsel %vm816, %v1891, %v1887
        %v1893 = vlaneseq
        %v1894 = vshrl.u32 %v1893, 7
        %v1895 = vsub.s32 %v806, %v1894
        %v1896 = vrot.slane %v1835, %v1895
        %v1897 = vlaneseq
        %v1898 = vshrl.u32 %v1897, 7
        %v1899 = vsub.s32 %v811, %v1898
        %v1900 = vrot.slane %v1838, %v1899
        %v1901 = vsel %vm816, %v1900, %v1896
        %v1902 = vlaneseq
        %v1903 = vshrl.u32 %v1902, 7
        %v1904 = vsub.s32 %v806, %v1903
        %v1905 = vrot.slane %v1841, %v1904
        %v1906 = vlaneseq
        %v1907 = vshrl.u32 %v1906, 7
        %v1908 = vsub.s32 %v811, %v1907
        %v1909 = vrot.slane %v1844, %v1908
        %v1910 = vsel %vm816, %v1909, %v1905
        %v1911 = vlaneseq
        %v1912 = vshrl.u32 %v1911, 7
        %v1913 = vsub.s32 %v806, %v1912
        %v1914 = vrot.slane %v1847, %v1913
        %v1915 = vlaneseq
        %v1916 = vshrl.u32 %v1915, 7
        %v1917 = vsub.s32 %v811, %v1916
        %v1918 = vrot.slane %v1850, %v1917
        %v1919 = vsel %vm816, %v1918, %v1914
        %v1920 = vlaneseq
        %v1921 = vshrl.u32 %v1920, 7
        %v1922 = vsub.s32 %v806, %v1921
        %v1923 = vrot.slane %v1853, %v1922
        %v1924 = vlaneseq
        %v1925 = vshrl.u32 %v1924, 7
        %v1926 = vsub.s32 %v811, %v1925
        %v1927 = vrot.slane %v1856, %v1926
        %v1928 = vsel %vm816, %v1927, %v1923
        %v1929 = vsel %vm881, %v1874, %v1865
        %v1930 = vsel %vm883, %v1883, %v1929
        %v1931 = vsel %vm885, %v1892, %v1930
        %v1932 = vsel %vm887, %v1901, %v1931
        %v1933 = vsel %vm889, %v1910, %v1932
        %v1934 = vsel %vm891, %v1919, %v1933
        %v1935 = vsel %vm893, %v1928, %v1934
        %v1937 = vsel %vm896, %v1935, 0.0
        %1938 = vadd.xlane.f32.xlu0 %v1937
        %v1939 = vpop.xlane.xlu0 %1938
        %v1940 = vlog2.pop %v1939
        %v1941 = vmul.f32 %v1940, 0.6931472
        %v1942 = vadd.f32 %v1941, %v1703
        %v1944 = vlaneseq
        %v1945 = vshrl.u32 %v1944, 7
        %v1946 = vsub.s32 0, %v1945
        %v1947 = vrot.slane %v1942, %v1946
        %v1948 = vlaneseq
        %v1949 = vshrl.u32 %v1948, 7
        %v1950 = vsub.s32 1, %v1949
        %v1951 = vrot.slane %v1942, %v1950
        %v1952 = vlaneseq
        %v1953 = vshrl.u32 %v1952, 7
        %v1954 = vsub.s32 2, %v1953
        %v1955 = vrot.slane %v1942, %v1954
        %v1956 = vlaneseq
        %v1957 = vshrl.u32 %v1956, 7
        %v1958 = vsub.s32 3, %v1957
        %v1959 = vrot.slane %v1942, %v1958
        %v1960 = vlaneseq
        %v1961 = vshrl.u32 %v1960, 7
        %v1962 = vsub.s32 4, %v1961
        %v1963 = vrot.slane %v1942, %v1962
        %v1964 = vlaneseq
        %v1965 = vshrl.u32 %v1964, 7
        %v1966 = vsub.s32 5, %v1965
        %v1967 = vrot.slane %v1942, %v1966
        %v1968 = vlaneseq
        %v1969 = vshrl.u32 %v1968, 7
        %v1970 = vsub.s32 6, %v1969
        %v1971 = vrot.slane %v1942, %v1970
        %v1972 = vlaneseq
        %v1973 = vshrl.u32 %v1972, 7
        %v1974 = vsub.s32 7, %v1973
        %v1975 = vrot.slane %v1942, %v1974
        %v1984 = vsub.f32 %v1559, %v1947
        %v1985 = vsub.f32 %v1562, %v1947
        %v1986 = vsub.f32 %v1565, %v1951
        %v1987 = vsub.f32 %v1568, %v1951
        %v1988 = vsub.f32 %v1571, %v1955
        %v1989 = vsub.f32 %v1574, %v1955
        %v1990 = vsub.f32 %v1577, %v1959
        %v1991 = vsub.f32 %v1580, %v1959
        %v1992 = vsub.f32 %v1583, %v1963
        %v1993 = vsub.f32 %v1586, %v1963
        %v1994 = vsub.f32 %v1589, %v1967
        %v1995 = vsub.f32 %v1592, %v1967
        %v1996 = vsub.f32 %v1595, %v1971
        %v1997 = vsub.f32 %v1598, %v1971
        %v1998 = vsub.f32 %v1601, %v1975
        %v1999 = vsub.f32 %v1604, %v1975
        %2016 = vset.pattern.permute.xlu0 0
        %2017 = vperm.xlu0 %2016, %v1984
        %v2018 = vpop.permute.xlu0 %2017
        %2019 = vset.pattern.permute.xlu0 0
        %2020 = vperm.xlu0 %2019, %v1985
        %v2021 = vpop.permute.xlu0 %2020
        %2022 = vset.pattern.permute.xlu0 0
        %2023 = vperm.xlu0 %2022, %v1986
        %v2024 = vpop.permute.xlu0 %2023
        %2025 = vset.pattern.permute.xlu0 0
        %2026 = vperm.xlu0 %2025, %v1987
        %v2027 = vpop.permute.xlu0 %2026
        %2028 = vset.pattern.permute.xlu0 0
        %2029 = vperm.xlu0 %2028, %v1988
        %v2030 = vpop.permute.xlu0 %2029
        %2031 = vset.pattern.permute.xlu0 0
        %2032 = vperm.xlu0 %2031, %v1989
        %v2033 = vpop.permute.xlu0 %2032
        %2034 = vset.pattern.permute.xlu0 0
        %2035 = vperm.xlu0 %2034, %v1990
        %v2036 = vpop.permute.xlu0 %2035
        %2037 = vset.pattern.permute.xlu0 0
        %2038 = vperm.xlu0 %2037, %v1991
        %v2039 = vpop.permute.xlu0 %2038
        %2040 = vset.pattern.permute.xlu0 0
        %2041 = vperm.xlu0 %2040, %v1992
        %v2042 = vpop.permute.xlu0 %2041
        %2043 = vset.pattern.permute.xlu0 0
        %2044 = vperm.xlu0 %2043, %v1993
        %v2045 = vpop.permute.xlu0 %2044
        %2046 = vset.pattern.permute.xlu0 0
        %2047 = vperm.xlu0 %2046, %v1994
        %v2048 = vpop.permute.xlu0 %2047
        %2049 = vset.pattern.permute.xlu0 0
        %2050 = vperm.xlu0 %2049, %v1995
        %v2051 = vpop.permute.xlu0 %2050
        %2052 = vset.pattern.permute.xlu0 0
        %2053 = vperm.xlu0 %2052, %v1996
        %v2054 = vpop.permute.xlu0 %2053
        %2055 = vset.pattern.permute.xlu0 0
        %2056 = vperm.xlu0 %2055, %v1997
        %v2057 = vpop.permute.xlu0 %2056
        %2058 = vset.pattern.permute.xlu0 0
        %2059 = vperm.xlu0 %2058, %v1998
        %v2060 = vpop.permute.xlu0 %2059
        %2061 = vset.pattern.permute.xlu0 0
        %2062 = vperm.xlu0 %2061, %v1999
        %v2063 = vpop.permute.xlu0 %2062
        %v2064 = vlaneseq
        %v2065 = vshrl.u32 %v2064, 7
        %v2066 = vsub.s32 %v806, %v2065
        %v2067 = vrot.slane %v2018, %v2066
        %v2068 = vlaneseq
        %v2069 = vshrl.u32 %v2068, 7
        %v2070 = vsub.s32 %v811, %v2069
        %v2071 = vrot.slane %v2021, %v2070
        %v2072 = vsel %vm816, %v2071, %v2067
        %v2073 = vlaneseq
        %v2074 = vshrl.u32 %v2073, 7
        %v2075 = vsub.s32 %v806, %v2074
        %v2076 = vrot.slane %v2024, %v2075
        %v2077 = vlaneseq
        %v2078 = vshrl.u32 %v2077, 7
        %v2079 = vsub.s32 %v811, %v2078
        %v2080 = vrot.slane %v2027, %v2079
        %v2081 = vsel %vm816, %v2080, %v2076
        %v2082 = vlaneseq
        %v2083 = vshrl.u32 %v2082, 7
        %v2084 = vsub.s32 %v806, %v2083
        %v2085 = vrot.slane %v2030, %v2084
        %v2086 = vlaneseq
        %v2087 = vshrl.u32 %v2086, 7
        %v2088 = vsub.s32 %v811, %v2087
        %v2089 = vrot.slane %v2033, %v2088
        %v2090 = vsel %vm816, %v2089, %v2085
        %v2091 = vlaneseq
        %v2092 = vshrl.u32 %v2091, 7
        %v2093 = vsub.s32 %v806, %v2092
        %v2094 = vrot.slane %v2036, %v2093
        %v2095 = vlaneseq
        %v2096 = vshrl.u32 %v2095, 7
        %v2097 = vsub.s32 %v811, %v2096
        %v2098 = vrot.slane %v2039, %v2097
        %v2099 = vsel %vm816, %v2098, %v2094
        %v2100 = vlaneseq
        %v2101 = vshrl.u32 %v2100, 7
        %v2102 = vsub.s32 %v806, %v2101
        %v2103 = vrot.slane %v2042, %v2102
        %v2104 = vlaneseq
        %v2105 = vshrl.u32 %v2104, 7
        %v2106 = vsub.s32 %v811, %v2105
        %v2107 = vrot.slane %v2045, %v2106
        %v2108 = vsel %vm816, %v2107, %v2103
        %v2109 = vlaneseq
        %v2110 = vshrl.u32 %v2109, 7
        %v2111 = vsub.s32 %v806, %v2110
        %v2112 = vrot.slane %v2048, %v2111
        %v2113 = vlaneseq
        %v2114 = vshrl.u32 %v2113, 7
        %v2115 = vsub.s32 %v811, %v2114
        %v2116 = vrot.slane %v2051, %v2115
        %v2117 = vsel %vm816, %v2116, %v2112
        %v2118 = vlaneseq
        %v2119 = vshrl.u32 %v2118, 7
        %v2120 = vsub.s32 %v806, %v2119
        %v2121 = vrot.slane %v2054, %v2120
        %v2122 = vlaneseq
        %v2123 = vshrl.u32 %v2122, 7
        %v2124 = vsub.s32 %v811, %v2123
        %v2125 = vrot.slane %v2057, %v2124
        %v2126 = vsel %vm816, %v2125, %v2121
        %v2127 = vlaneseq
        %v2128 = vshrl.u32 %v2127, 7
        %v2129 = vsub.s32 %v806, %v2128
        %v2130 = vrot.slane %v2060, %v2129
        %v2131 = vlaneseq
        %v2132 = vshrl.u32 %v2131, 7
        %v2133 = vsub.s32 %v811, %v2132
        %v2134 = vrot.slane %v2063, %v2133
        %v2135 = vsel %vm816, %v2134, %v2130
        %v2136 = vsel %vm881, %v2081, %v2072
        %v2137 = vsel %vm883, %v2090, %v2136
        %v2138 = vsel %vm885, %v2099, %v2137
        %v2139 = vsel %vm887, %v2108, %v2138
        %v2140 = vsel %vm889, %v2117, %v2139
        %v2141 = vsel %vm891, %v2126, %v2140
        %v2142 = vsel %vm893, %v2135, %v2141
        %s2144 = scalar_lea.vmem %s330, 8 [#allocation11]
        %2145 = vst.msk [vmem:[%s2144] sm:$0xff] %vm896, %v2142
        %s2146 = sand.u32 %s165, 1
        %s2147 = scalar_lea.sflag [#allocation5], %s2146
        %s2148 = sand.u32 %s165, 1
        %s2149 = smul.addr %s2148, 16
        %s2150 = scalar_lea.vmem [#allocation11], %s2149
        // Predicated region
        $region61: #{tpu_custom_call.1} parent=39 // pred_check
          %p2151 = pneg %p175
        $region62: #{tpu_custom_call.1} parent=39 // pred_check_branch
          %2153 = sbr.rel (%p2151) target = $region64
        $region63: #{tpu_custom_call.1} parent=39 // pred_region
          %s2154 = smul.u32 2, %s30
          %s2156 = ssub.s32 256, 256
          %2157 = vsyncadd %s2147, %s2156
          %s2158 = smul.addr %s2154, 2
          %s2159 = sadd.s32 %s31, %s2158
          %s2160 = smul.addr %s2159, 128
          %s2161 = scalar_lea.hbm %s5, %s2160
          %s2162 = sshll.u32 %s2150, 4
          %s2163 = int_to_ptr.vmem [resolvable:$true] %s2162
          %2168 = dma.vmem_to_hbm [thread:$0]  %s2163, 256, %s2161, %s2147, 128, 256, 8
        $region64: #{tpu_custom_call.1} parent=39 // pred_fallthru
          _
      $region40: #{tpu_custom_call.1} parent=5 // pred_fallthru
        _
      %p2169 = scmp.le.s32.totalorder 2, %s21
      // Predicated region
      $region65: #{tpu_custom_call.1} parent=5 // pred_check
        %p2170 = pneg %p2169
      $region66: #{tpu_custom_call.1} parent=5 // pred_check_branch
        %2172 = sbr.rel (%p2170) target = $region68
      $region67: #{tpu_custom_call.1} parent=5 // pred_region
        %s2173 = ssub.s32 %s21, 2
        // Predicated region
        $region69: #{tpu_custom_call.1} parent=67 // pred_check
          %p2174 = pneg %p181
        $region70: #{tpu_custom_call.1} parent=67 // pred_check_branch
          %2176 = sbr.rel (%p2174) target = $region72
        $region71: #{tpu_custom_call.1} parent=67 // pred_region
          %s2177 = sand.u32 %s166, 1
          %s2178 = scalar_lea.sflag [#allocation5], %s2177
          %s2179 = sand.u32 %s166, 1
          %s2180 = smul.addr %s2179, 16
          %s2181 = scalar_lea.vmem [#allocation11], %s2180
          %2182 = dma.done %s2178, 256
        $region72: #{tpu_custom_call.1} parent=67 // pred_fallthru
          _
      $region68: #{tpu_custom_call.1} parent=5 // pred_fallthru
        _
    $region6: #{tpu_custom_call.1} parent=1 // loop_footer
      %s25 = sadd.s32 1, %s21
    $region7: #{tpu_custom_call.1} parent=1 // loop_footer_branch
      %20 = sbr.rel target = $region3
    $region8: #{tpu_custom_call.1} parent=1 // loop_exit
      _
    %2183 = vsyncpa [#allocation4], 1
    %s2184 = scalar_lea.sflag [#allocation4], 1
    %2185 = vsyncpa %s2184, 1
    %2186 = vsyncpa [#allocation7], 1
    %s2187 = scalar_lea.sflag [#allocation7], 1
    %2188 = vsyncpa %s2187, 1
    %2189 = vsyncpa [#allocation10], 1
    %2190 = vsyncpa [#allocation5], 1
    %s2191 = scalar_lea.sflag [#allocation5], 1
    %2192 = vsyncpa %s2191, 1

</llo_original>
